<compile_context>
chip_gen: v7x
topology: tpu7x:2x2x1
jax: 0.10.0
libtpu: 0.0.40
codegen_flags: <defaults>
</compile_context>

<pallas_src>
import functools

import jax
import jax.numpy as jnp
import numpy as np
from jax.experimental import pallas as pl
from jax.experimental.pallas import tpu as pltpu


def _round_up(x, m):
    return ((x + m - 1) // m) * m


def ultimus_kernel(x_ref, w_rep_ref, sel_red_ref, wo_ref, o_ref, *, rep_w):
    """One batch tile (FOLD batch rows per folded row, j fastest on lanes)."""
    x = x_ref[...]              # (blk, FOLD*F)        = (blk, 384)
    w_rep = w_rep_ref[...]      # (FOLD*F, 3*FOLD*NN)  = (384, 1536)
    sel_red = sel_red_ref[...]  # (FOLD*NN, FOLD*N)    = (512, 64)
    wo = wo_ref[...]            # (FOLD*N, FOLD*F)     = (64, 384)

    # Fused projection + replication: a single MXU matmul produces, for every
    # folded batch sub-row s and flattened attention index c = i*N + j,
    #   q_rep[b, s*NN + c] = scale * Q[FOLD*b+s, i]
    #   k_rep[b, s*NN + c] =         K[FOLD*b+s, j]
    #   v_rep[b, s*NN + c] =         V[FOLD*b+s, i]
    rep = jnp.dot(x, w_rep, preferred_element_type=jnp.float32)   # (blk, 3*rep_w)
    q_rep = rep[:, :rep_w]              # 512-lane (128-aligned) slices:
    k_rep = rep[:, rep_w:2 * rep_w]     # vreg-boundary picks, no relayout.
    v_rep = rep[:, 2 * rep_w:]

    # Attention logits, laid out (blk, FOLD*NN) with j fastest on lanes.
    s = q_rep * k_rep
    # Subtracting the per-row max (a constant w.r.t. the softmax axis i for
    # every (batch, j) group) keeps exp arguments <= 0 without changing
    # softmax(axis=i).
    s = s - jnp.max(s, axis=1, keepdims=True)
    e = jnp.exp(s)

    # num[b, s*N + j] = sum_i V[..,i] * e[..]   den[b, s*N + j] = sum_i e[..]
    num = jnp.dot(v_rep * e, sel_red, preferred_element_type=jnp.float32)  # (blk, 64)
    den = jnp.dot(e, sel_red, preferred_element_type=jnp.float32)          # (blk, 64)
    # approx=True -> EUP vrcp (free bundle slot); ~1e-3 relative error, well
    # inside the 5e-3 test tolerance.  Switch to approx=False if tighter
    # accuracy vs. the fp32 reference is ever required.
    z = num * pl.reciprocal(den, approx=True)                             # (blk, 64)

    # Output projection; FOLD*F = 384 lanes -> unmasked, lane-dense stores.
    o_ref[...] = jnp.dot(z, wo, preferred_element_type=jnp.float32)        # (blk, 384)


@functools.partial(jax.jit, static_argnames=("block_rows",))
def ultimus(x, wq, wk, wv, wo, *, block_rows=None):
    """Ultimus forward (patch_num=1).

    x:        (B, F) activations.
    wq/wk/wv: (F, N) projection weights stored (in, out) so the kernel
              computes x @ W (transpose of the PyTorch nn.Linear layout).
    wo:       (N, F) output projection, same (in, out) convention.
    """
    B, F = x.shape
    N = wq.shape[1]
    NN = N * N
    FOLD = 8                              # batch rows folded into lanes
    scale = 1.0 / float(N) ** 0.5

    # ---- Wrapper-side constant / weight prep (tiny, one-time per call). ----
    # Replication selectors as compile-time numpy constants; flattened (i, j)
    # attention index c = i*N + j (j fastest).
    c = np.arange(NN)
    sel_i = np.zeros((N, NN), np.float32)
    sel_i[c // N, c] = 1.0                # broadcast a length-N vector along j
    sel_j = np.zeros((N, NN), np.float32)
    sel_j[c % N, c] = 1.0                 # broadcast a length-N vector along i
    sel_red = np.zeros((NN, N), np.float32)
    sel_red[c, c % N] = 1.0               # reduce over i for each j

    # Fold the selectors (and the 1/sqrt(N) scale) into the projection weights
    # so one matmul yields the replicated q/k/v tensors, and build FOLD-way
    # block-diagonal versions so FOLD batch rows ride the lane dimension.
    eye = jnp.eye(FOLD, dtype=jnp.float32)
    wq_rep = jnp.kron(eye, (wq * scale) @ jnp.asarray(sel_i))   # (FOLD*F, FOLD*NN)
    wk_rep = jnp.kron(eye, wk @ jnp.asarray(sel_j))             # (FOLD*F, FOLD*NN)
    wv_rep = jnp.kron(eye, wv @ jnp.asarray(sel_i))             # (FOLD*F, FOLD*NN)
    w_rep = jnp.concatenate([wq_rep, wk_rep, wv_rep], axis=1)   # (384, 1536)
    sel_red_big = jnp.kron(eye, jnp.asarray(sel_red))           # (512, 64)
    wo_big = jnp.kron(eye, wo)                                  # (64, 384)

    # ---- Batch tiling: FOLD rows per folded row, block_rows folded rows/step.
    n_fold = -(-B // FOLD)                # folded rows needed (ceil)
    if block_rows is None:
        # Large tiles amortize the ~0.35us/step pipeline overhead; 512 folded
        # rows (= 4096 batch rows, ~0.75 MiB per in/out block) keeps per-step
        # VMEM well inside the 32 MiB scoped default (incl. v7x, 64 MiB
        # physical) and still yields >= 2 grid steps for large B so v7x's two
        # TensorCores both get sharded work via the "parallel" axis.
        block_rows = min(n_fold, 512)
    if block_rows < n_fold:
        block_rows = _round_up(block_rows, 8)   # sublane multiple when tiled
    else:
        block_rows = n_fold                     # single step: block == array

    n_fold_p = _round_up(n_fold, block_rows)
    Bp = n_fold_p * FOLD
    xp = x if Bp == B else jnp.pad(x, ((0, Bp - B), (0, 0)))
    x_fold = xp.reshape(n_fold_p, FOLD * F)     # free contiguous reshape

    grid = (n_fold_p // block_rows,)
    kernel = functools.partial(ultimus_kernel, rep_w=FOLD * NN)
    out_fold = pl.pallas_call(
        kernel,
        out_shape=jax.ShapeDtypeStruct((n_fold_p, FOLD * F), jnp.float32),
        grid_spec=pltpu.PrefetchScalarGridSpec(
            num_scalar_prefetch=0,
            grid=grid,
            in_specs=[
                pl.BlockSpec((block_rows, FOLD * F), lambda i: (i, 0)),      # x tile
                pl.BlockSpec((FOLD * F, 3 * FOLD * NN), lambda i: (0, 0)),   # W_rep
                pl.BlockSpec((FOLD * NN, FOLD * N), lambda i: (0, 0)),       # sel_red
                pl.BlockSpec((FOLD * N, FOLD * F), lambda i: (0, 0)),        # Wo
            ],
            out_specs=pl.BlockSpec((block_rows, FOLD * F), lambda i: (i, 0)),
        ),
        compiler_params=pltpu.CompilerParams(
            dimension_semantics=("parallel",),
        ),
    )(x_fold, w_rep, sel_red_big, wo_big)

    out = out_fold.reshape(Bp, F)               # free contiguous reshape
    return out if Bp == B else out[:B]


def ultimus_reference(x, wq, wk, wv, wo):
    hi = jax.lax.Precision.HIGHEST
    n = wq.shape[1]
    q = jnp.dot(x, wq, precision=hi)
    k = jnp.dot(x, wk, precision=hi)
    v = jnp.dot(x, wv, precision=hi)
    am = q[:, :, None] * k[:, None, :] / (n ** 0.5)
    am = jax.nn.softmax(am, axis=1)
    z = jnp.sum(v[:, :, None] * am, axis=1)
    return jnp.dot(z, wo, precision=hi)


if __name__ == "__main__":
    input_neuron = 48
    neuron_to_scale = 8
    B = 16  # batch (patch_num = 1, so x.shape[0] // patch_num == B)

    key = jax.random.PRNGKey(0)
    kx, kq, kk, kv, ko = jax.random.split(key, 5)

    x = jax.random.normal(kx, (B, input_neuron), dtype=jnp.float32)

    # Deterministic "PyTorch-Linear-like" init: U(-1/sqrt(fan_in), 1/sqrt(fan_in)),
    # stored as (in, out) so the kernel computes x @ W.
    lim_in = 1.0 / (input_neuron ** 0.5)
    lim_n = 1.0 / (neuron_to_scale ** 0.5)
    wq = jax.random.uniform(kq, (input_neuron, neuron_to_scale),
                            minval=-lim_in, maxval=lim_in, dtype=jnp.float32)
    wk = jax.random.uniform(kk, (input_neuron, neuron_to_scale),
                            minval=-lim_in, maxval=lim_in, dtype=jnp.float32)
    wv = jax.random.uniform(kv, (input_neuron, neuron_to_scale),
                            minval=-lim_in, maxval=lim_in, dtype=jnp.float32)
    wo = jax.random.uniform(ko, (neuron_to_scale, input_neuron),
                            minval=-lim_n, maxval=lim_n, dtype=jnp.float32)

    out = jax.block_until_ready(ultimus(x, wq, wk, wv, wo))

    ref = ultimus_reference(x, wq, wk, wv, wo)
    np.testing.assert_allclose(np.asarray(out), np.asarray(ref),
                               rtol=5e-3, atol=5e-3)

    print("KERNEL_OK")
</pallas_src>

<mosaic_0001>
module attributes {stable_mosaic.version = 11 : i64} {
  func.func @ultimus_kernel(%arg0: i32, %arg1: memref<2x384xf32, #tpu.memory_space<vmem>>, %arg2: memref<384x1536xf32, #tpu.memory_space<vmem>>, %arg3: memref<512x64xf32, #tpu.memory_space<vmem>>, %arg4: memref<64x384xf32, #tpu.memory_space<vmem>>, %arg5: memref<2x384xf32, #tpu.memory_space<vmem>>) attributes {dimension_semantics = [#tpu.dimension_semantics<parallel>], iteration_bounds = array<i64: 1>, scalar_prefetch = 0 : i64, scratch_operands = 0 : i64, tpu.core_type = #tpu.core_type<tc>, window_params = [{transform_indices = @transform_0, window_bounds = array<i64: 2, 384>}, {pipeline_mode = #tpu.pipeline_mode<synchronous>, transform_indices = @transform_1, window_bounds = array<i64: 384, 1536>}, {pipeline_mode = #tpu.pipeline_mode<synchronous>, transform_indices = @transform_2, window_bounds = array<i64: 512, 64>}, {pipeline_mode = #tpu.pipeline_mode<synchronous>, transform_indices = @transform_3, window_bounds = array<i64: 64, 384>}, {transform_indices = @transform_4, window_bounds = array<i64: 2, 384>}]} {
    %c0 = arith.constant 0 : index
    %c0_0 = arith.constant 0 : index
    %0 = vector.load %arg1[%c0, %c0_0] : memref<2x384xf32, #tpu.memory_space<vmem>>, vector<2x384xf32>
    %c0_1 = arith.constant 0 : index
    %c0_2 = arith.constant 0 : index
    %1 = vector.load %arg2[%c0_1, %c0_2] : memref<384x1536xf32, #tpu.memory_space<vmem>>, vector<384x1536xf32>
    %c0_3 = arith.constant 0 : index
    %c0_4 = arith.constant 0 : index
    %2 = vector.load %arg3[%c0_3, %c0_4] : memref<512x64xf32, #tpu.memory_space<vmem>>, vector<512x64xf32>
    %c0_5 = arith.constant 0 : index
    %c0_6 = arith.constant 0 : index
    %3 = vector.load %arg4[%c0_5, %c0_6] : memref<64x384xf32, #tpu.memory_space<vmem>>, vector<64x384xf32>
    %cst = arith.constant dense<0.000000e+00> : vector<2x1536xf32>
    %4 = tpu.matmul %0, %1, %cst {dimension_numbers = #tpu.dot_dimension_numbers<[1], [0], [0], [1], [0, 0, 1, 1], [], []>} : vector<2x384xf32>, vector<384x1536xf32>, vector<2x1536xf32> -> vector<2x1536xf32>
    %5 = vector.extract_strided_slice %4 {offsets = [0, 0], sizes = [2, 512], strides = [1, 1]} : vector<2x1536xf32> to vector<2x512xf32>
    %6 = vector.extract_strided_slice %4 {offsets = [0, 512], sizes = [2, 512], strides = [1, 1]} : vector<2x1536xf32> to vector<2x512xf32>
    %7 = vector.extract_strided_slice %4 {offsets = [0, 1024], sizes = [2, 512], strides = [1, 1]} : vector<2x1536xf32> to vector<2x512xf32>
    %8 = arith.mulf %5, %6 : vector<2x512xf32>
    %cst_7 = arith.constant dense<0xFF800000> : vector<2xf32>
    %9 = vector.multi_reduction <maximumf>, %8, %cst_7 [1] : vector<2x512xf32> to vector<2xf32>
    %10 = vector.shape_cast %9 : vector<2xf32> to vector<2x1xf32>
    %11 = vector.broadcast %10 : vector<2x1xf32> to vector<2x512xf32>
    %12 = arith.subf %8, %11 : vector<2x512xf32>
    %13 = math.exp %12 : vector<2x512xf32>
    %14 = arith.mulf %7, %13 : vector<2x512xf32>
    %cst_8 = arith.constant dense<0.000000e+00> : vector<2x64xf32>
    %15 = tpu.matmul %14, %2, %cst_8 {dimension_numbers = #tpu.dot_dimension_numbers<[1], [0], [0], [1], [0, 0, 1, 1], [], []>} : vector<2x512xf32>, vector<512x64xf32>, vector<2x64xf32> -> vector<2x64xf32>
    %cst_9 = arith.constant dense<0.000000e+00> : vector<2x64xf32>
    %16 = tpu.matmul %13, %2, %cst_9 {dimension_numbers = #tpu.dot_dimension_numbers<[1], [0], [0], [1], [0, 0, 1, 1], [], []>} : vector<2x512xf32>, vector<512x64xf32>, vector<2x64xf32> -> vector<2x64xf32>
    %17 = tpu.reciprocal %16 {approx = true} : vector<2x64xf32> -> vector<2x64xf32>
    %18 = arith.mulf %15, %17 : vector<2x64xf32>
    %cst_10 = arith.constant dense<0.000000e+00> : vector<2x384xf32>
    %19 = tpu.matmul %18, %3, %cst_10 {dimension_numbers = #tpu.dot_dimension_numbers<[1], [0], [0], [1], [0, 0, 1, 1], [], []>} : vector<2x64xf32>, vector<64x384xf32>, vector<2x384xf32> -> vector<2x384xf32>
    %c0_11 = arith.constant 0 : index
    %c0_12 = arith.constant 0 : index
    %20 = vector.load %arg5[%c0_11, %c0_12] : memref<2x384xf32, #tpu.memory_space<vmem>>, vector<2x384xf32>
    tpu.vector_store %arg5[%c0_11, %c0_12], %19 {strides = array<i32>} : memref<2x384xf32, #tpu.memory_space<vmem>>, vector<2x384xf32>,
    return
  }
  func.func @transform_0(%arg0: i32) -> (i32, i32) {
    %c0_i32 = arith.constant 0 : i32
    %c0_i32_0 = arith.constant 0 : i32
    return %arg0, %c0_i32 : i32, i32
  }
  func.func @transform_1(%arg0: i32) -> (i32, i32) {
    %c0_i32 = arith.constant 0 : i32
    %c0_i32_0 = arith.constant 0 : i32
    %c0_i32_1 = arith.constant 0 : i32
    return %c0_i32, %c0_i32_0 : i32, i32
  }
  func.func @transform_2(%arg0: i32) -> (i32, i32) {
    %c0_i32 = arith.constant 0 : i32
    %c0_i32_0 = arith.constant 0 : i32
    %c0_i32_1 = arith.constant 0 : i32
    return %c0_i32, %c0_i32_0 : i32, i32
  }
  func.func @transform_3(%arg0: i32) -> (i32, i32) {
    %c0_i32 = arith.constant 0 : i32
    %c0_i32_0 = arith.constant 0 : i32
    %c0_i32_1 = arith.constant 0 : i32
    return %c0_i32, %c0_i32_0 : i32, i32
  }
  func.func @transform_4(%arg0: i32) -> (i32, i32) {
    %c0_i32 = arith.constant 0 : i32
    %c0_i32_0 = arith.constant 0 : i32
    return %arg0, %c0_i32 : i32, i32
  }
}

</mosaic_0001>

<llo_original>
// kernel: ultimus.1
$region0: #{ultimus.1}
  #allocation0 [shape = 'u32[]', space=smem, size = 0x4, offset = 0x4, fixed_abs, tag = 'smem constant byte address 0x4 - core index']
  #allocation1 [shape = 'u32[144,128]{1,0:T(1,128)}', space=vmem, size = 0x12000, scoped, tag = 'internal scratch']
  %s0 = inlined_call_operand.vmem [shape: f32[2,384], index: 0, kind: input, shape index: {}]
  %s1 = inlined_call_operand.vmem [shape: f32[384,1536], index: 1, kind: input, shape index: {}]
  %s2 = inlined_call_operand.vmem [shape: f32[512,64], index: 2, kind: input, shape index: {}]
  %s3 = inlined_call_operand.vmem [shape: f32[64,384], index: 3, kind: input, shape index: {}]
  %s4 = inlined_call_operand.vmem [shape: f32[2,384], index: 4, kind: output, shape index: {}]
  %s5 = sld [smem:[#allocation0]]
  $region26: #{ultimus.1} parent=0
    _
  %s7 = ssub.s32 1, %s5
  %s8 = scalar_select 0, %s7, %s5
  // Predicated region
  $region2: #{ultimus.1} parent=0 // pred_check
    _
  $region3: #{ultimus.1} parent=0 // pred_check_branch
    %10 = sbr.rel (0) target = $region5
  $region4: #{ultimus.1} parent=0 // pred_region
    _
  $region5: #{ultimus.1} parent=0 // pred_fallthru
    _
  // Predicated region
  $region6: #{ultimus.1} parent=0 // pred_check
    _
  $region7: #{ultimus.1} parent=0 // pred_check_branch
    %12 = sbr.rel (0) target = $region9
  $region8: #{ultimus.1} parent=0 // pred_region
    _
  $region9: #{ultimus.1} parent=0 // pred_fallthru
    _
  // Predicated region
  $region10: #{ultimus.1} parent=0 // pred_check
    _
  $region11: #{ultimus.1} parent=0 // pred_check_branch
    %14 = sbr.rel (0) target = $region13
  $region12: #{ultimus.1} parent=0 // pred_region
    _
  $region13: #{ultimus.1} parent=0 // pred_fallthru
    _
  // Predicated region
  $region14: #{ultimus.1} parent=0 // pred_check
    _
  $region15: #{ultimus.1} parent=0 // pred_check_branch
    %16 = sbr.rel (0) target = $region17
  $region16: #{ultimus.1} parent=0 // pred_region
    _
  $region17: #{ultimus.1} parent=0 // pred_fallthru
    _
  %v17 = vld [vmem:[%s0] sm:$0x3f]
  %v18 = vld [vmem:[%s1] sm:$0xff]
  %v19 = vld [vmem:[%s1 + $0x8] sm:$0xff]
  %v20 = vld [vmem:[%s1 + $0x10] sm:$0xff]
  %v21 = vld [vmem:[%s1 + $0x18] sm:$0xff]
  %v22 = vld [vmem:[%s1 + $0x20] sm:$0xff]
  %v23 = vld [vmem:[%s1 + $0x28] sm:$0xff]
  %v24 = vld [vmem:[%s1 + $0x30] sm:$0xff]
  %v25 = vld [vmem:[%s1 + $0x38] sm:$0xff]
  %v26 = vld [vmem:[%s1 + $0x40] sm:$0xff]
  %v27 = vld [vmem:[%s1 + $0x48] sm:$0xff]
  %v28 = vld [vmem:[%s1 + $0x50] sm:$0xff]
  %v29 = vld [vmem:[%s1 + $0x58] sm:$0xff]
  %v30 = vld [vmem:[%s1 + $0x60] sm:$0xff]
  %v31 = vld [vmem:[%s1 + $0x68] sm:$0xff]
  %v32 = vld [vmem:[%s1 + $0x70] sm:$0xff]
  %v33 = vld [vmem:[%s1 + $0x78] sm:$0xff]
  %v34 = vld [vmem:[%s1 + $0x80] sm:$0xff]
  %v35 = vld [vmem:[%s1 + $0x88] sm:$0xff]
  %v36 = vld [vmem:[%s1 + $0x90] sm:$0xff]
  %v37 = vld [vmem:[%s1 + $0x98] sm:$0xff]
  %v38 = vld [vmem:[%s1 + $0xa0] sm:$0xff]
  %v39 = vld [vmem:[%s1 + $0xa8] sm:$0xff]
  %v40 = vld [vmem:[%s1 + $0xb0] sm:$0xff]
  %v41 = vld [vmem:[%s1 + $0xb8] sm:$0xff]
  %v42 = vld [vmem:[%s1 + $0xc0] sm:$0xff]
  %v43 = vld [vmem:[%s1 + $0xc8] sm:$0xff]
  %v44 = vld [vmem:[%s1 + $0xd0] sm:$0xff]
  %v45 = vld [vmem:[%s1 + $0xd8] sm:$0xff]
  %v46 = vld [vmem:[%s1 + $0xe0] sm:$0xff]
  %v47 = vld [vmem:[%s1 + $0xe8] sm:$0xff]
  %v48 = vld [vmem:[%s1 + $0xf0] sm:$0xff]
  %v49 = vld [vmem:[%s1 + $0xf8] sm:$0xff]
  %v50 = vld [vmem:[%s1 + $0x100] sm:$0xff]
  %v51 = vld [vmem:[%s1 + $0x108] sm:$0xff]
  %v52 = vld [vmem:[%s1 + $0x110] sm:$0xff]
  %v53 = vld [vmem:[%s1 + $0x118] sm:$0xff]
  %v54 = vld [vmem:[%s1 + $0x120] sm:$0xff]
  %v55 = vld [vmem:[%s1 + $0x128] sm:$0xff]
  %v56 = vld [vmem:[%s1 + $0x130] sm:$0xff]
  %v57 = vld [vmem:[%s1 + $0x138] sm:$0xff]
  %v58 = vld [vmem:[%s1 + $0x140] sm:$0xff]
  %v59 = vld [vmem:[%s1 + $0x148] sm:$0xff]
  %v60 = vld [vmem:[%s1 + $0x150] sm:$0xff]
  %v61 = vld [vmem:[%s1 + $0x158] sm:$0xff]
  %v62 = vld [vmem:[%s1 + $0x160] sm:$0xff]
  %v63 = vld [vmem:[%s1 + $0x168] sm:$0xff]
  %v64 = vld [vmem:[%s1 + $0x170] sm:$0xff]
  %v65 = vld [vmem:[%s1 + $0x178] sm:$0xff]
  %v66 = vld [vmem:[%s1 + $0x180] sm:$0xff]
  %v67 = vld [vmem:[%s1 + $0x188] sm:$0xff]
  %v68 = vld [vmem:[%s1 + $0x190] sm:$0xff]
  %v69 = vld [vmem:[%s1 + $0x198] sm:$0xff]
  %v70 = vld [vmem:[%s1 + $0x1a0] sm:$0xff]
  %v71 = vld [vmem:[%s1 + $0x1a8] sm:$0xff]
  %v72 = vld [vmem:[%s1 + $0x1b0] sm:$0xff]
  %v73 = vld [vmem:[%s1 + $0x1b8] sm:$0xff]
  %v74 = vld [vmem:[%s1 + $0x1c0] sm:$0xff]
  %v75 = vld [vmem:[%s1 + $0x1c8] sm:$0xff]
  %v76 = vld [vmem:[%s1 + $0x1d0] sm:$0xff]
  %v77 = vld [vmem:[%s1 + $0x1d8] sm:$0xff]
  %v78 = vld [vmem:[%s1 + $0x1e0] sm:$0xff]
  %v79 = vld [vmem:[%s1 + $0x1e8] sm:$0xff]
  %v80 = vld [vmem:[%s1 + $0x1f0] sm:$0xff]
  %v81 = vld [vmem:[%s1 + $0x1f8] sm:$0xff]
  %v82 = vld [vmem:[%s1 + $0x200] sm:$0xff]
  %v83 = vld [vmem:[%s1 + $0x208] sm:$0xff]
  %v84 = vld [vmem:[%s1 + $0x210] sm:$0xff]
  %v85 = vld [vmem:[%s1 + $0x218] sm:$0xff]
  %v86 = vld [vmem:[%s1 + $0x220] sm:$0xff]
  %v87 = vld [vmem:[%s1 + $0x228] sm:$0xff]
  %v88 = vld [vmem:[%s1 + $0x230] sm:$0xff]
  %v89 = vld [vmem:[%s1 + $0x238] sm:$0xff]
  %v90 = vld [vmem:[%s1 + $0x240] sm:$0xff]
  %v91 = vld [vmem:[%s1 + $0x248] sm:$0xff]
  %v92 = vld [vmem:[%s1 + $0x250] sm:$0xff]
  %v93 = vld [vmem:[%s1 + $0x258] sm:$0xff]
  %v94 = vld [vmem:[%s1 + $0x260] sm:$0xff]
  %v95 = vld [vmem:[%s1 + $0x268] sm:$0xff]
  %v96 = vld [vmem:[%s1 + $0x270] sm:$0xff]
  %v97 = vld [vmem:[%s1 + $0x278] sm:$0xff]
  %v98 = vld [vmem:[%s1 + $0x280] sm:$0xff]
  %v99 = vld [vmem:[%s1 + $0x288] sm:$0xff]
  %v100 = vld [vmem:[%s1 + $0x290] sm:$0xff]
  %v101 = vld [vmem:[%s1 + $0x298] sm:$0xff]
  %v102 = vld [vmem:[%s1 + $0x2a0] sm:$0xff]
  %v103 = vld [vmem:[%s1 + $0x2a8] sm:$0xff]
  %v104 = vld [vmem:[%s1 + $0x2b0] sm:$0xff]
  %v105 = vld [vmem:[%s1 + $0x2b8] sm:$0xff]
  %v106 = vld [vmem:[%s1 + $0x2c0] sm:$0xff]
  %v107 = vld [vmem:[%s1 + $0x2c8] sm:$0xff]
  %v108 = vld [vmem:[%s1 + $0x2d0] sm:$0xff]
  %v109 = vld [vmem:[%s1 + $0x2d8] sm:$0xff]
  %v110 = vld [vmem:[%s1 + $0x2e0] sm:$0xff]
  %v111 = vld [vmem:[%s1 + $0x2e8] sm:$0xff]
  %v112 = vld [vmem:[%s1 + $0x2f0] sm:$0xff]
  %v113 = vld [vmem:[%s1 + $0x2f8] sm:$0xff]
  %v114 = vld [vmem:[%s1 + $0x300] sm:$0xff]
  %v115 = vld [vmem:[%s1 + $0x308] sm:$0xff]
  %v116 = vld [vmem:[%s1 + $0x310] sm:$0xff]
  %v117 = vld [vmem:[%s1 + $0x318] sm:$0xff]
  %v118 = vld [vmem:[%s1 + $0x320] sm:$0xff]
  %v119 = vld [vmem:[%s1 + $0x328] sm:$0xff]
  %v120 = vld [vmem:[%s1 + $0x330] sm:$0xff]
  %v121 = vld [vmem:[%s1 + $0x338] sm:$0xff]
  %v122 = vld [vmem:[%s1 + $0x340] sm:$0xff]
  %v123 = vld [vmem:[%s1 + $0x348] sm:$0xff]
  %v124 = vld [vmem:[%s1 + $0x350] sm:$0xff]
  %v125 = vld [vmem:[%s1 + $0x358] sm:$0xff]
  %v126 = vld [vmem:[%s1 + $0x360] sm:$0xff]
  %v127 = vld [vmem:[%s1 + $0x368] sm:$0xff]
  %v128 = vld [vmem:[%s1 + $0x370] sm:$0xff]
  %v129 = vld [vmem:[%s1 + $0x378] sm:$0xff]
  %v130 = vld [vmem:[%s1 + $0x380] sm:$0xff]
  %v131 = vld [vmem:[%s1 + $0x388] sm:$0xff]
  %v132 = vld [vmem:[%s1 + $0x390] sm:$0xff]
  %v133 = vld [vmem:[%s1 + $0x398] sm:$0xff]
  %v134 = vld [vmem:[%s1 + $0x3a0] sm:$0xff]
  %v135 = vld [vmem:[%s1 + $0x3a8] sm:$0xff]
  %v136 = vld [vmem:[%s1 + $0x3b0] sm:$0xff]
  %v137 = vld [vmem:[%s1 + $0x3b8] sm:$0xff]
  %v138 = vld [vmem:[%s1 + $0x3c0] sm:$0xff]
  %v139 = vld [vmem:[%s1 + $0x3c8] sm:$0xff]
  %v140 = vld [vmem:[%s1 + $0x3d0] sm:$0xff]
  %v141 = vld [vmem:[%s1 + $0x3d8] sm:$0xff]
  %v142 = vld [vmem:[%s1 + $0x3e0] sm:$0xff]
  %v143 = vld [vmem:[%s1 + $0x3e8] sm:$0xff]
  %v144 = vld [vmem:[%s1 + $0x3f0] sm:$0xff]
  %v145 = vld [vmem:[%s1 + $0x3f8] sm:$0xff]
  %v146 = vld [vmem:[%s1 + $0x400] sm:$0xff]
  %v147 = vld [vmem:[%s1 + $0x408] sm:$0xff]
  %v148 = vld [vmem:[%s1 + $0x410] sm:$0xff]
  %v149 = vld [vmem:[%s1 + $0x418] sm:$0xff]
  %v150 = vld [vmem:[%s1 + $0x420] sm:$0xff]
  %v151 = vld [vmem:[%s1 + $0x428] sm:$0xff]
  %v152 = vld [vmem:[%s1 + $0x430] sm:$0xff]
  %v153 = vld [vmem:[%s1 + $0x438] sm:$0xff]
  %v154 = vld [vmem:[%s1 + $0x440] sm:$0xff]
  %v155 = vld [vmem:[%s1 + $0x448] sm:$0xff]
  %v156 = vld [vmem:[%s1 + $0x450] sm:$0xff]
  %v157 = vld [vmem:[%s1 + $0x458] sm:$0xff]
  %v158 = vld [vmem:[%s1 + $0x460] sm:$0xff]
  %v159 = vld [vmem:[%s1 + $0x468] sm:$0xff]
  %v160 = vld [vmem:[%s1 + $0x470] sm:$0xff]
  %v161 = vld [vmem:[%s1 + $0x478] sm:$0xff]
  %v162 = vld [vmem:[%s1 + $0x480] sm:$0xff]
  %v163 = vld [vmem:[%s1 + $0x488] sm:$0xff]
  %v164 = vld [vmem:[%s1 + $0x490] sm:$0xff]
  %v165 = vld [vmem:[%s1 + $0x498] sm:$0xff]
  %v166 = vld [vmem:[%s1 + $0x4a0] sm:$0xff]
  %v167 = vld [vmem:[%s1 + $0x4a8] sm:$0xff]
  %v168 = vld [vmem:[%s1 + $0x4b0] sm:$0xff]
  %v169 = vld [vmem:[%s1 + $0x4b8] sm:$0xff]
  %v170 = vld [vmem:[%s1 + $0x4c0] sm:$0xff]
  %v171 = vld [vmem:[%s1 + $0x4c8] sm:$0xff]
  %v172 = vld [vmem:[%s1 + $0x4d0] sm:$0xff]
  %v173 = vld [vmem:[%s1 + $0x4d8] sm:$0xff]
  %v174 = vld [vmem:[%s1 + $0x4e0] sm:$0xff]
  %v175 = vld [vmem:[%s1 + $0x4e8] sm:$0xff]
  %v176 = vld [vmem:[%s1 + $0x4f0] sm:$0xff]
  %v177 = vld [vmem:[%s1 + $0x4f8] sm:$0xff]
  %v178 = vld [vmem:[%s1 + $0x500] sm:$0xff]
  %v179 = vld [vmem:[%s1 + $0x508] sm:$0xff]
  %v180 = vld [vmem:[%s1 + $0x510] sm:$0xff]
  %v181 = vld [vmem:[%s1 + $0x518] sm:$0xff]
  %v182 = vld [vmem:[%s1 + $0x520] sm:$0xff]
  %v183 = vld [vmem:[%s1 + $0x528] sm:$0xff]
  %v184 = vld [vmem:[%s1 + $0x530] sm:$0xff]
  %v185 = vld [vmem:[%s1 + $0x538] sm:$0xff]
  %v186 = vld [vmem:[%s1 + $0x540] sm:$0xff]
  %v187 = vld [vmem:[%s1 + $0x548] sm:$0xff]
  %v188 = vld [vmem:[%s1 + $0x550] sm:$0xff]
  %v189 = vld [vmem:[%s1 + $0x558] sm:$0xff]
  %v190 = vld [vmem:[%s1 + $0x560] sm:$0xff]
  %v191 = vld [vmem:[%s1 + $0x568] sm:$0xff]
  %v192 = vld [vmem:[%s1 + $0x570] sm:$0xff]
  %v193 = vld [vmem:[%s1 + $0x578] sm:$0xff]
  %v194 = vld [vmem:[%s1 + $0x580] sm:$0xff]
  %v195 = vld [vmem:[%s1 + $0x588] sm:$0xff]
  %v196 = vld [vmem:[%s1 + $0x590] sm:$0xff]
  %v197 = vld [vmem:[%s1 + $0x598] sm:$0xff]
  %v198 = vld [vmem:[%s1 + $0x5a0] sm:$0xff]
  %v199 = vld [vmem:[%s1 + $0x5a8] sm:$0xff]
  %v200 = vld [vmem:[%s1 + $0x5b0] sm:$0xff]
  %v201 = vld [vmem:[%s1 + $0x5b8] sm:$0xff]
  %v202 = vld [vmem:[%s1 + $0x5c0] sm:$0xff]
  %v203 = vld [vmem:[%s1 + $0x5c8] sm:$0xff]
  %v204 = vld [vmem:[%s1 + $0x5d0] sm:$0xff]
  %v205 = vld [vmem:[%s1 + $0x5d8] sm:$0xff]
  %v206 = vld [vmem:[%s1 + $0x5e0] sm:$0xff]
  %v207 = vld [vmem:[%s1 + $0x5e8] sm:$0xff]
  %v208 = vld [vmem:[%s1 + $0x5f0] sm:$0xff]
  %v209 = vld [vmem:[%s1 + $0x5f8] sm:$0xff]
  %v210 = vld [vmem:[%s1 + $0x600] sm:$0xff]
  %v211 = vld [vmem:[%s1 + $0x608] sm:$0xff]
  %v212 = vld [vmem:[%s1 + $0x610] sm:$0xff]
  %v213 = vld [vmem:[%s1 + $0x618] sm:$0xff]
  %v214 = vld [vmem:[%s1 + $0x620] sm:$0xff]
  %v215 = vld [vmem:[%s1 + $0x628] sm:$0xff]
  %v216 = vld [vmem:[%s1 + $0x630] sm:$0xff]
  %v217 = vld [vmem:[%s1 + $0x638] sm:$0xff]
  %v218 = vld [vmem:[%s1 + $0x640] sm:$0xff]
  %v219 = vld [vmem:[%s1 + $0x648] sm:$0xff]
  %v220 = vld [vmem:[%s1 + $0x650] sm:$0xff]
  %v221 = vld [vmem:[%s1 + $0x658] sm:$0xff]
  %v222 = vld [vmem:[%s1 + $0x660] sm:$0xff]
  %v223 = vld [vmem:[%s1 + $0x668] sm:$0xff]
  %v224 = vld [vmem:[%s1 + $0x670] sm:$0xff]
  %v225 = vld [vmem:[%s1 + $0x678] sm:$0xff]
  %v226 = vld [vmem:[%s1 + $0x680] sm:$0xff]
  %v227 = vld [vmem:[%s1 + $0x688] sm:$0xff]
  %v228 = vld [vmem:[%s1 + $0x690] sm:$0xff]
  %v229 = vld [vmem:[%s1 + $0x698] sm:$0xff]
  %v230 = vld [vmem:[%s1 + $0x6a0] sm:$0xff]
  %v231 = vld [vmem:[%s1 + $0x6a8] sm:$0xff]
  %v232 = vld [vmem:[%s1 + $0x6b0] sm:$0xff]
  %v233 = vld [vmem:[%s1 + $0x6b8] sm:$0xff]
  %v234 = vld [vmem:[%s1 + $0x6c0] sm:$0xff]
  %v235 = vld [vmem:[%s1 + $0x6c8] sm:$0xff]
  %v236 = vld [vmem:[%s1 + $0x6d0] sm:$0xff]
  %v237 = vld [vmem:[%s1 + $0x6d8] sm:$0xff]
  %v238 = vld [vmem:[%s1 + $0x6e0] sm:$0xff]
  %v239 = vld [vmem:[%s1 + $0x6e8] sm:$0xff]
  %v240 = vld [vmem:[%s1 + $0x6f0] sm:$0xff]
  %v241 = vld [vmem:[%s1 + $0x6f8] sm:$0xff]
  %v242 = vld [vmem:[%s1 + $0x700] sm:$0xff]
  %v243 = vld [vmem:[%s1 + $0x708] sm:$0xff]
  %v244 = vld [vmem:[%s1 + $0x710] sm:$0xff]
  %v245 = vld [vmem:[%s1 + $0x718] sm:$0xff]
  %v246 = vld [vmem:[%s1 + $0x720] sm:$0xff]
  %v247 = vld [vmem:[%s1 + $0x728] sm:$0xff]
  %v248 = vld [vmem:[%s1 + $0x730] sm:$0xff]
  %v249 = vld [vmem:[%s1 + $0x738] sm:$0xff]
  %v250 = vld [vmem:[%s1 + $0x740] sm:$0xff]
  %v251 = vld [vmem:[%s1 + $0x748] sm:$0xff]
  %v252 = vld [vmem:[%s1 + $0x750] sm:$0xff]
  %v253 = vld [vmem:[%s1 + $0x758] sm:$0xff]
  %v254 = vld [vmem:[%s1 + $0x760] sm:$0xff]
  %v255 = vld [vmem:[%s1 + $0x768] sm:$0xff]
  %v256 = vld [vmem:[%s1 + $0x770] sm:$0xff]
  %v257 = vld [vmem:[%s1 + $0x778] sm:$0xff]
  %v258 = vld [vmem:[%s1 + $0x780] sm:$0xff]
  %v259 = vld [vmem:[%s1 + $0x788] sm:$0xff]
  %v260 = vld [vmem:[%s1 + $0x790] sm:$0xff]
  %v261 = vld [vmem:[%s1 + $0x798] sm:$0xff]
  %v262 = vld [vmem:[%s1 + $0x7a0] sm:$0xff]
  %v263 = vld [vmem:[%s1 + $0x7a8] sm:$0xff]
  %v264 = vld [vmem:[%s1 + $0x7b0] sm:$0xff]
  %v265 = vld [vmem:[%s1 + $0x7b8] sm:$0xff]
  %v266 = vld [vmem:[%s1 + $0x7c0] sm:$0xff]
  %v267 = vld [vmem:[%s1 + $0x7c8] sm:$0xff]
  %v268 = vld [vmem:[%s1 + $0x7d0] sm:$0xff]
  %v269 = vld [vmem:[%s1 + $0x7d8] sm:$0xff]
  %v270 = vld [vmem:[%s1 + $0x7e0] sm:$0xff]
  %v271 = vld [vmem:[%s1 + $0x7e8] sm:$0xff]
  %v272 = vld [vmem:[%s1 + $0x7f0] sm:$0xff]
  %v273 = vld [vmem:[%s1 + $0x7f8] sm:$0xff]
  %v274 = vld [vmem:[%s1 + $0x800] sm:$0xff]
  %v275 = vld [vmem:[%s1 + $0x808] sm:$0xff]
  %v276 = vld [vmem:[%s1 + $0x810] sm:$0xff]
  %v277 = vld [vmem:[%s1 + $0x818] sm:$0xff]
  %v278 = vld [vmem:[%s1 + $0x820] sm:$0xff]
  %v279 = vld [vmem:[%s1 + $0x828] sm:$0xff]
  %v280 = vld [vmem:[%s1 + $0x830] sm:$0xff]
  %v281 = vld [vmem:[%s1 + $0x838] sm:$0xff]
  %v282 = vld [vmem:[%s1 + $0x840] sm:$0xff]
  %v283 = vld [vmem:[%s1 + $0x848] sm:$0xff]
  %v284 = vld [vmem:[%s1 + $0x850] sm:$0xff]
  %v285 = vld [vmem:[%s1 + $0x858] sm:$0xff]
  %v286 = vld [vmem:[%s1 + $0x860] sm:$0xff]
  %v287 = vld [vmem:[%s1 + $0x868] sm:$0xff]
  %v288 = vld [vmem:[%s1 + $0x870] sm:$0xff]
  %v289 = vld [vmem:[%s1 + $0x878] sm:$0xff]
  %v290 = vld [vmem:[%s1 + $0x880] sm:$0xff]
  %v291 = vld [vmem:[%s1 + $0x888] sm:$0xff]
  %v292 = vld [vmem:[%s1 + $0x890] sm:$0xff]
  %v293 = vld [vmem:[%s1 + $0x898] sm:$0xff]
  %v294 = vld [vmem:[%s1 + $0x8a0] sm:$0xff]
  %v295 = vld [vmem:[%s1 + $0x8a8] sm:$0xff]
  %v296 = vld [vmem:[%s1 + $0x8b0] sm:$0xff]
  %v297 = vld [vmem:[%s1 + $0x8b8] sm:$0xff]
  %v298 = vld [vmem:[%s1 + $0x8c0] sm:$0xff]
  %v299 = vld [vmem:[%s1 + $0x8c8] sm:$0xff]
  %v300 = vld [vmem:[%s1 + $0x8d0] sm:$0xff]
  %v301 = vld [vmem:[%s1 + $0x8d8] sm:$0xff]
  %v302 = vld [vmem:[%s1 + $0x8e0] sm:$0xff]
  %v303 = vld [vmem:[%s1 + $0x8e8] sm:$0xff]
  %v304 = vld [vmem:[%s1 + $0x8f0] sm:$0xff]
  %v305 = vld [vmem:[%s1 + $0x8f8] sm:$0xff]
  %v306 = vld [vmem:[%s1 + $0x900] sm:$0xff]
  %v307 = vld [vmem:[%s1 + $0x908] sm:$0xff]
  %v308 = vld [vmem:[%s1 + $0x910] sm:$0xff]
  %v309 = vld [vmem:[%s1 + $0x918] sm:$0xff]
  %v310 = vld [vmem:[%s1 + $0x920] sm:$0xff]
  %v311 = vld [vmem:[%s1 + $0x928] sm:$0xff]
  %v312 = vld [vmem:[%s1 + $0x930] sm:$0xff]
  %v313 = vld [vmem:[%s1 + $0x938] sm:$0xff]
  %v314 = vld [vmem:[%s1 + $0x940] sm:$0xff]
  %v315 = vld [vmem:[%s1 + $0x948] sm:$0xff]
  %v316 = vld [vmem:[%s1 + $0x950] sm:$0xff]
  %v317 = vld [vmem:[%s1 + $0x958] sm:$0xff]
  %v318 = vld [vmem:[%s1 + $0x960] sm:$0xff]
  %v319 = vld [vmem:[%s1 + $0x968] sm:$0xff]
  %v320 = vld [vmem:[%s1 + $0x970] sm:$0xff]
  %v321 = vld [vmem:[%s1 + $0x978] sm:$0xff]
  %v322 = vld [vmem:[%s1 + $0x980] sm:$0xff]
  %v323 = vld [vmem:[%s1 + $0x988] sm:$0xff]
  %v324 = vld [vmem:[%s1 + $0x990] sm:$0xff]
  %v325 = vld [vmem:[%s1 + $0x998] sm:$0xff]
  %v326 = vld [vmem:[%s1 + $0x9a0] sm:$0xff]
  %v327 = vld [vmem:[%s1 + $0x9a8] sm:$0xff]
  %v328 = vld [vmem:[%s1 + $0x9b0] sm:$0xff]
  %v329 = vld [vmem:[%s1 + $0x9b8] sm:$0xff]
  %v330 = vld [vmem:[%s1 + $0x9c0] sm:$0xff]
  %v331 = vld [vmem:[%s1 + $0x9c8] sm:$0xff]
  %v332 = vld [vmem:[%s1 + $0x9d0] sm:$0xff]
  %v333 = vld [vmem:[%s1 + $0x9d8] sm:$0xff]
  %v334 = vld [vmem:[%s1 + $0x9e0] sm:$0xff]
  %v335 = vld [vmem:[%s1 + $0x9e8] sm:$0xff]
  %v336 = vld [vmem:[%s1 + $0x9f0] sm:$0xff]
  %v337 = vld [vmem:[%s1 + $0x9f8] sm:$0xff]
  %v338 = vld [vmem:[%s1 + $0xa00] sm:$0xff]
  %v339 = vld [vmem:[%s1 + $0xa08] sm:$0xff]
  %v340 = vld [vmem:[%s1 + $0xa10] sm:$0xff]
  %v341 = vld [vmem:[%s1 + $0xa18] sm:$0xff]
  %v342 = vld [vmem:[%s1 + $0xa20] sm:$0xff]
  %v343 = vld [vmem:[%s1 + $0xa28] sm:$0xff]
  %v344 = vld [vmem:[%s1 + $0xa30] sm:$0xff]
  %v345 = vld [vmem:[%s1 + $0xa38] sm:$0xff]
  %v346 = vld [vmem:[%s1 + $0xa40] sm:$0xff]
  %v347 = vld [vmem:[%s1 + $0xa48] sm:$0xff]
  %v348 = vld [vmem:[%s1 + $0xa50] sm:$0xff]
  %v349 = vld [vmem:[%s1 + $0xa58] sm:$0xff]
  %v350 = vld [vmem:[%s1 + $0xa60] sm:$0xff]
  %v351 = vld [vmem:[%s1 + $0xa68] sm:$0xff]
  %v352 = vld [vmem:[%s1 + $0xa70] sm:$0xff]
  %v353 = vld [vmem:[%s1 + $0xa78] sm:$0xff]
  %v354 = vld [vmem:[%s1 + $0xa80] sm:$0xff]
  %v355 = vld [vmem:[%s1 + $0xa88] sm:$0xff]
  %v356 = vld [vmem:[%s1 + $0xa90] sm:$0xff]
  %v357 = vld [vmem:[%s1 + $0xa98] sm:$0xff]
  %v358 = vld [vmem:[%s1 + $0xaa0] sm:$0xff]
  %v359 = vld [vmem:[%s1 + $0xaa8] sm:$0xff]
  %v360 = vld [vmem:[%s1 + $0xab0] sm:$0xff]
  %v361 = vld [vmem:[%s1 + $0xab8] sm:$0xff]
  %v362 = vld [vmem:[%s1 + $0xac0] sm:$0xff]
  %v363 = vld [vmem:[%s1 + $0xac8] sm:$0xff]
  %v364 = vld [vmem:[%s1 + $0xad0] sm:$0xff]
  %v365 = vld [vmem:[%s1 + $0xad8] sm:$0xff]
  %v366 = vld [vmem:[%s1 + $0xae0] sm:$0xff]
  %v367 = vld [vmem:[%s1 + $0xae8] sm:$0xff]
  %v368 = vld [vmem:[%s1 + $0xaf0] sm:$0xff]
  %v369 = vld [vmem:[%s1 + $0xaf8] sm:$0xff]
  %v370 = vld [vmem:[%s1 + $0xb00] sm:$0xff]
  %v371 = vld [vmem:[%s1 + $0xb08] sm:$0xff]
  %v372 = vld [vmem:[%s1 + $0xb10] sm:$0xff]
  %v373 = vld [vmem:[%s1 + $0xb18] sm:$0xff]
  %v374 = vld [vmem:[%s1 + $0xb20] sm:$0xff]
  %v375 = vld [vmem:[%s1 + $0xb28] sm:$0xff]
  %v376 = vld [vmem:[%s1 + $0xb30] sm:$0xff]
  %v377 = vld [vmem:[%s1 + $0xb38] sm:$0xff]
  %v378 = vld [vmem:[%s1 + $0xb40] sm:$0xff]
  %v379 = vld [vmem:[%s1 + $0xb48] sm:$0xff]
  %v380 = vld [vmem:[%s1 + $0xb50] sm:$0xff]
  %v381 = vld [vmem:[%s1 + $0xb58] sm:$0xff]
  %v382 = vld [vmem:[%s1 + $0xb60] sm:$0xff]
  %v383 = vld [vmem:[%s1 + $0xb68] sm:$0xff]
  %v384 = vld [vmem:[%s1 + $0xb70] sm:$0xff]
  %v385 = vld [vmem:[%s1 + $0xb78] sm:$0xff]
  %v386 = vld [vmem:[%s1 + $0xb80] sm:$0xff]
  %v387 = vld [vmem:[%s1 + $0xb88] sm:$0xff]
  %v388 = vld [vmem:[%s1 + $0xb90] sm:$0xff]
  %v389 = vld [vmem:[%s1 + $0xb98] sm:$0xff]
  %v390 = vld [vmem:[%s1 + $0xba0] sm:$0xff]
  %v391 = vld [vmem:[%s1 + $0xba8] sm:$0xff]
  %v392 = vld [vmem:[%s1 + $0xbb0] sm:$0xff]
  %v393 = vld [vmem:[%s1 + $0xbb8] sm:$0xff]
  %v394 = vld [vmem:[%s1 + $0xbc0] sm:$0xff]
  %v395 = vld [vmem:[%s1 + $0xbc8] sm:$0xff]
  %v396 = vld [vmem:[%s1 + $0xbd0] sm:$0xff]
  %v397 = vld [vmem:[%s1 + $0xbd8] sm:$0xff]
  %v398 = vld [vmem:[%s1 + $0xbe0] sm:$0xff]
  %v399 = vld [vmem:[%s1 + $0xbe8] sm:$0xff]
  %v400 = vld [vmem:[%s1 + $0xbf0] sm:$0xff]
  %v401 = vld [vmem:[%s1 + $0xbf8] sm:$0xff]
  %v402 = vld [vmem:[%s1 + $0xc00] sm:$0xff]
  %v403 = vld [vmem:[%s1 + $0xc08] sm:$0xff]
  %v404 = vld [vmem:[%s1 + $0xc10] sm:$0xff]
  %v405 = vld [vmem:[%s1 + $0xc18] sm:$0xff]
  %v406 = vld [vmem:[%s1 + $0xc20] sm:$0xff]
  %v407 = vld [vmem:[%s1 + $0xc28] sm:$0xff]
  %v408 = vld [vmem:[%s1 + $0xc30] sm:$0xff]
  %v409 = vld [vmem:[%s1 + $0xc38] sm:$0xff]
  %v410 = vld [vmem:[%s1 + $0xc40] sm:$0xff]
  %v411 = vld [vmem:[%s1 + $0xc48] sm:$0xff]
  %v412 = vld [vmem:[%s1 + $0xc50] sm:$0xff]
  %v413 = vld [vmem:[%s1 + $0xc58] sm:$0xff]
  %v414 = vld [vmem:[%s1 + $0xc60] sm:$0xff]
  %v415 = vld [vmem:[%s1 + $0xc68] sm:$0xff]
  %v416 = vld [vmem:[%s1 + $0xc70] sm:$0xff]
  %v417 = vld [vmem:[%s1 + $0xc78] sm:$0xff]
  %v418 = vld [vmem:[%s1 + $0xc80] sm:$0xff]
  %v419 = vld [vmem:[%s1 + $0xc88] sm:$0xff]
  %v420 = vld [vmem:[%s1 + $0xc90] sm:$0xff]
  %v421 = vld [vmem:[%s1 + $0xc98] sm:$0xff]
  %v422 = vld [vmem:[%s1 + $0xca0] sm:$0xff]
  %v423 = vld [vmem:[%s1 + $0xca8] sm:$0xff]
  %v424 = vld [vmem:[%s1 + $0xcb0] sm:$0xff]
  %v425 = vld [vmem:[%s1 + $0xcb8] sm:$0xff]
  %v426 = vld [vmem:[%s1 + $0xcc0] sm:$0xff]
  %v427 = vld [vmem:[%s1 + $0xcc8] sm:$0xff]
  %v428 = vld [vmem:[%s1 + $0xcd0] sm:$0xff]
  %v429 = vld [vmem:[%s1 + $0xcd8] sm:$0xff]
  %v430 = vld [vmem:[%s1 + $0xce0] sm:$0xff]
  %v431 = vld [vmem:[%s1 + $0xce8] sm:$0xff]
  %v432 = vld [vmem:[%s1 + $0xcf0] sm:$0xff]
  %v433 = vld [vmem:[%s1 + $0xcf8] sm:$0xff]
  %v434 = vld [vmem:[%s1 + $0xd00] sm:$0xff]
  %v435 = vld [vmem:[%s1 + $0xd08] sm:$0xff]
  %v436 = vld [vmem:[%s1 + $0xd10] sm:$0xff]
  %v437 = vld [vmem:[%s1 + $0xd18] sm:$0xff]
  %v438 = vld [vmem:[%s1 + $0xd20] sm:$0xff]
  %v439 = vld [vmem:[%s1 + $0xd28] sm:$0xff]
  %v440 = vld [vmem:[%s1 + $0xd30] sm:$0xff]
  %v441 = vld [vmem:[%s1 + $0xd38] sm:$0xff]
  %v442 = vld [vmem:[%s1 + $0xd40] sm:$0xff]
  %v443 = vld [vmem:[%s1 + $0xd48] sm:$0xff]
  %v444 = vld [vmem:[%s1 + $0xd50] sm:$0xff]
  %v445 = vld [vmem:[%s1 + $0xd58] sm:$0xff]
  %v446 = vld [vmem:[%s1 + $0xd60] sm:$0xff]
  %v447 = vld [vmem:[%s1 + $0xd68] sm:$0xff]
  %v448 = vld [vmem:[%s1 + $0xd70] sm:$0xff]
  %v449 = vld [vmem:[%s1 + $0xd78] sm:$0xff]
  %v450 = vld [vmem:[%s1 + $0xd80] sm:$0xff]
  %v451 = vld [vmem:[%s1 + $0xd88] sm:$0xff]
  %v452 = vld [vmem:[%s1 + $0xd90] sm:$0xff]
  %v453 = vld [vmem:[%s1 + $0xd98] sm:$0xff]
  %v454 = vld [vmem:[%s1 + $0xda0] sm:$0xff]
  %v455 = vld [vmem:[%s1 + $0xda8] sm:$0xff]
  %v456 = vld [vmem:[%s1 + $0xdb0] sm:$0xff]
  %v457 = vld [vmem:[%s1 + $0xdb8] sm:$0xff]
  %v458 = vld [vmem:[%s1 + $0xdc0] sm:$0xff]
  %v459 = vld [vmem:[%s1 + $0xdc8] sm:$0xff]
  %v460 = vld [vmem:[%s1 + $0xdd0] sm:$0xff]
  %v461 = vld [vmem:[%s1 + $0xdd8] sm:$0xff]
  %v462 = vld [vmem:[%s1 + $0xde0] sm:$0xff]
  %v463 = vld [vmem:[%s1 + $0xde8] sm:$0xff]
  %v464 = vld [vmem:[%s1 + $0xdf0] sm:$0xff]
  %v465 = vld [vmem:[%s1 + $0xdf8] sm:$0xff]
  %v466 = vld [vmem:[%s1 + $0xe00] sm:$0xff]
  %v467 = vld [vmem:[%s1 + $0xe08] sm:$0xff]
  %v468 = vld [vmem:[%s1 + $0xe10] sm:$0xff]
  %v469 = vld [vmem:[%s1 + $0xe18] sm:$0xff]
  %v470 = vld [vmem:[%s1 + $0xe20] sm:$0xff]
  %v471 = vld [vmem:[%s1 + $0xe28] sm:$0xff]
  %v472 = vld [vmem:[%s1 + $0xe30] sm:$0xff]
  %v473 = vld [vmem:[%s1 + $0xe38] sm:$0xff]
  %v474 = vld [vmem:[%s1 + $0xe40] sm:$0xff]
  %v475 = vld [vmem:[%s1 + $0xe48] sm:$0xff]
  %v476 = vld [vmem:[%s1 + $0xe50] sm:$0xff]
  %v477 = vld [vmem:[%s1 + $0xe58] sm:$0xff]
  %v478 = vld [vmem:[%s1 + $0xe60] sm:$0xff]
  %v479 = vld [vmem:[%s1 + $0xe68] sm:$0xff]
  %v480 = vld [vmem:[%s1 + $0xe70] sm:$0xff]
  %v481 = vld [vmem:[%s1 + $0xe78] sm:$0xff]
  %v482 = vld [vmem:[%s1 + $0xe80] sm:$0xff]
  %v483 = vld [vmem:[%s1 + $0xe88] sm:$0xff]
  %v484 = vld [vmem:[%s1 + $0xe90] sm:$0xff]
  %v485 = vld [vmem:[%s1 + $0xe98] sm:$0xff]
  %v486 = vld [vmem:[%s1 + $0xea0] sm:$0xff]
  %v487 = vld [vmem:[%s1 + $0xea8] sm:$0xff]
  %v488 = vld [vmem:[%s1 + $0xeb0] sm:$0xff]
  %v489 = vld [vmem:[%s1 + $0xeb8] sm:$0xff]
  %v490 = vld [vmem:[%s1 + $0xec0] sm:$0xff]
  %v491 = vld [vmem:[%s1 + $0xec8] sm:$0xff]
  %v492 = vld [vmem:[%s1 + $0xed0] sm:$0xff]
  %v493 = vld [vmem:[%s1 + $0xed8] sm:$0xff]
  %v494 = vld [vmem:[%s1 + $0xee0] sm:$0xff]
  %v495 = vld [vmem:[%s1 + $0xee8] sm:$0xff]
  %v496 = vld [vmem:[%s1 + $0xef0] sm:$0xff]
  %v497 = vld [vmem:[%s1 + $0xef8] sm:$0xff]
  %v498 = vld [vmem:[%s1 + $0xf00] sm:$0xff]
  %v499 = vld [vmem:[%s1 + $0xf08] sm:$0xff]
  %v500 = vld [vmem:[%s1 + $0xf10] sm:$0xff]
  %v501 = vld [vmem:[%s1 + $0xf18] sm:$0xff]
  %v502 = vld [vmem:[%s1 + $0xf20] sm:$0xff]
  %v503 = vld [vmem:[%s1 + $0xf28] sm:$0xff]
  %v504 = vld [vmem:[%s1 + $0xf30] sm:$0xff]
  %v505 = vld [vmem:[%s1 + $0xf38] sm:$0xff]
  %v506 = vld [vmem:[%s1 + $0xf40] sm:$0xff]
  %v507 = vld [vmem:[%s1 + $0xf48] sm:$0xff]
  %v508 = vld [vmem:[%s1 + $0xf50] sm:$0xff]
  %v509 = vld [vmem:[%s1 + $0xf58] sm:$0xff]
  %v510 = vld [vmem:[%s1 + $0xf60] sm:$0xff]
  %v511 = vld [vmem:[%s1 + $0xf68] sm:$0xff]
  %v512 = vld [vmem:[%s1 + $0xf70] sm:$0xff]
  %v513 = vld [vmem:[%s1 + $0xf78] sm:$0xff]
  %v514 = vld [vmem:[%s1 + $0xf80] sm:$0xff]
  %v515 = vld [vmem:[%s1 + $0xf88] sm:$0xff]
  %v516 = vld [vmem:[%s1 + $0xf90] sm:$0xff]
  %v517 = vld [vmem:[%s1 + $0xf98] sm:$0xff]
  %v518 = vld [vmem:[%s1 + $0xfa0] sm:$0xff]
  %v519 = vld [vmem:[%s1 + $0xfa8] sm:$0xff]
  %v520 = vld [vmem:[%s1 + $0xfb0] sm:$0xff]
  %v521 = vld [vmem:[%s1 + $0xfb8] sm:$0xff]
  %v522 = vld [vmem:[%s1 + $0xfc0] sm:$0xff]
  %v523 = vld [vmem:[%s1 + $0xfc8] sm:$0xff]
  %v524 = vld [vmem:[%s1 + $0xfd0] sm:$0xff]
  %v525 = vld [vmem:[%s1 + $0xfd8] sm:$0xff]
  %v526 = vld [vmem:[%s1 + $0xfe0] sm:$0xff]
  %v527 = vld [vmem:[%s1 + $0xfe8] sm:$0xff]
  %v528 = vld [vmem:[%s1 + $0xff0] sm:$0xff]
  %v529 = vld [vmem:[%s1 + $0xff8] sm:$0xff]
  %v530 = vld [vmem:[%s1 + $0x1000] sm:$0xff]
  %v531 = vld [vmem:[%s1 + $0x1008] sm:$0xff]
  %v532 = vld [vmem:[%s1 + $0x1010] sm:$0xff]
  %v533 = vld [vmem:[%s1 + $0x1018] sm:$0xff]
  %v534 = vld [vmem:[%s1 + $0x1020] sm:$0xff]
  %v535 = vld [vmem:[%s1 + $0x1028] sm:$0xff]
  %v536 = vld [vmem:[%s1 + $0x1030] sm:$0xff]
  %v537 = vld [vmem:[%s1 + $0x1038] sm:$0xff]
  %v538 = vld [vmem:[%s1 + $0x1040] sm:$0xff]
  %v539 = vld [vmem:[%s1 + $0x1048] sm:$0xff]
  %v540 = vld [vmem:[%s1 + $0x1050] sm:$0xff]
  %v541 = vld [vmem:[%s1 + $0x1058] sm:$0xff]
  %v542 = vld [vmem:[%s1 + $0x1060] sm:$0xff]
  %v543 = vld [vmem:[%s1 + $0x1068] sm:$0xff]
  %v544 = vld [vmem:[%s1 + $0x1070] sm:$0xff]
  %v545 = vld [vmem:[%s1 + $0x1078] sm:$0xff]
  %v546 = vld [vmem:[%s1 + $0x1080] sm:$0xff]
  %v547 = vld [vmem:[%s1 + $0x1088] sm:$0xff]
  %v548 = vld [vmem:[%s1 + $0x1090] sm:$0xff]
  %v549 = vld [vmem:[%s1 + $0x1098] sm:$0xff]
  %v550 = vld [vmem:[%s1 + $0x10a0] sm:$0xff]
  %v551 = vld [vmem:[%s1 + $0x10a8] sm:$0xff]
  %v552 = vld [vmem:[%s1 + $0x10b0] sm:$0xff]
  %v553 = vld [vmem:[%s1 + $0x10b8] sm:$0xff]
  %v554 = vld [vmem:[%s1 + $0x10c0] sm:$0xff]
  %v555 = vld [vmem:[%s1 + $0x10c8] sm:$0xff]
  %v556 = vld [vmem:[%s1 + $0x10d0] sm:$0xff]
  %v557 = vld [vmem:[%s1 + $0x10d8] sm:$0xff]
  %v558 = vld [vmem:[%s1 + $0x10e0] sm:$0xff]
  %v559 = vld [vmem:[%s1 + $0x10e8] sm:$0xff]
  %v560 = vld [vmem:[%s1 + $0x10f0] sm:$0xff]
  %v561 = vld [vmem:[%s1 + $0x10f8] sm:$0xff]
  %v562 = vld [vmem:[%s1 + $0x1100] sm:$0xff]
  %v563 = vld [vmem:[%s1 + $0x1108] sm:$0xff]
  %v564 = vld [vmem:[%s1 + $0x1110] sm:$0xff]
  %v565 = vld [vmem:[%s1 + $0x1118] sm:$0xff]
  %v566 = vld [vmem:[%s1 + $0x1120] sm:$0xff]
  %v567 = vld [vmem:[%s1 + $0x1128] sm:$0xff]
  %v568 = vld [vmem:[%s1 + $0x1130] sm:$0xff]
  %v569 = vld [vmem:[%s1 + $0x1138] sm:$0xff]
  %v570 = vld [vmem:[%s1 + $0x1140] sm:$0xff]
  %v571 = vld [vmem:[%s1 + $0x1148] sm:$0xff]
  %v572 = vld [vmem:[%s1 + $0x1150] sm:$0xff]
  %v573 = vld [vmem:[%s1 + $0x1158] sm:$0xff]
  %v574 = vld [vmem:[%s1 + $0x1160] sm:$0xff]
  %v575 = vld [vmem:[%s1 + $0x1168] sm:$0xff]
  %v576 = vld [vmem:[%s1 + $0x1170] sm:$0xff]
  %v577 = vld [vmem:[%s1 + $0x1178] sm:$0xff]
  %v578 = vld [vmem:[%s1 + $0x1180] sm:$0xff]
  %v579 = vld [vmem:[%s1 + $0x1188] sm:$0xff]
  %v580 = vld [vmem:[%s1 + $0x1190] sm:$0xff]
  %v581 = vld [vmem:[%s1 + $0x1198] sm:$0xff]
  %v582 = vld [vmem:[%s1 + $0x11a0] sm:$0xff]
  %v583 = vld [vmem:[%s1 + $0x11a8] sm:$0xff]
  %v584 = vld [vmem:[%s1 + $0x11b0] sm:$0xff]
  %v585 = vld [vmem:[%s1 + $0x11b8] sm:$0xff]
  %v586 = vld [vmem:[%s1 + $0x11c0] sm:$0xff]
  %v587 = vld [vmem:[%s1 + $0x11c8] sm:$0xff]
  %v588 = vld [vmem:[%s1 + $0x11d0] sm:$0xff]
  %v589 = vld [vmem:[%s1 + $0x11d8] sm:$0xff]
  %v590 = vld [vmem:[%s1 + $0x11e0] sm:$0xff]
  %v591 = vld [vmem:[%s1 + $0x11e8] sm:$0xff]
  %v592 = vld [vmem:[%s1 + $0x11f0] sm:$0xff]
  %v593 = vld [vmem:[%s1 + $0x11f8] sm:$0xff]
  %v594 = vld [vmem:[%s2] sm:$0xff]
  %v595 = vld [vmem:[%s2 + $0x8] sm:$0xff]
  %v596 = vld [vmem:[%s2 + $0x10] sm:$0xff]
  %v597 = vld [vmem:[%s2 + $0x18] sm:$0xff]
  %v598 = vld [vmem:[%s2 + $0x20] sm:$0xff]
  %v599 = vld [vmem:[%s2 + $0x28] sm:$0xff]
  %v600 = vld [vmem:[%s2 + $0x30] sm:$0xff]
  %v601 = vld [vmem:[%s2 + $0x38] sm:$0xff]
  %v602 = vld [vmem:[%s2 + $0x40] sm:$0xff]
  %v603 = vld [vmem:[%s2 + $0x48] sm:$0xff]
  %v604 = vld [vmem:[%s2 + $0x50] sm:$0xff]
  %v605 = vld [vmem:[%s2 + $0x58] sm:$0xff]
  %v606 = vld [vmem:[%s2 + $0x60] sm:$0xff]
  %v607 = vld [vmem:[%s2 + $0x68] sm:$0xff]
  %v608 = vld [vmem:[%s2 + $0x70] sm:$0xff]
  %v609 = vld [vmem:[%s2 + $0x78] sm:$0xff]
  %v610 = vld [vmem:[%s2 + $0x80] sm:$0xff]
  %v611 = vld [vmem:[%s2 + $0x88] sm:$0xff]
  %v612 = vld [vmem:[%s2 + $0x90] sm:$0xff]
  %v613 = vld [vmem:[%s2 + $0x98] sm:$0xff]
  %v614 = vld [vmem:[%s2 + $0xa0] sm:$0xff]
  %v615 = vld [vmem:[%s2 + $0xa8] sm:$0xff]
  %v616 = vld [vmem:[%s2 + $0xb0] sm:$0xff]
  %v617 = vld [vmem:[%s2 + $0xb8] sm:$0xff]
  %v618 = vld [vmem:[%s2 + $0xc0] sm:$0xff]
  %v619 = vld [vmem:[%s2 + $0xc8] sm:$0xff]
  %v620 = vld [vmem:[%s2 + $0xd0] sm:$0xff]
  %v621 = vld [vmem:[%s2 + $0xd8] sm:$0xff]
  %v622 = vld [vmem:[%s2 + $0xe0] sm:$0xff]
  %v623 = vld [vmem:[%s2 + $0xe8] sm:$0xff]
  %v624 = vld [vmem:[%s2 + $0xf0] sm:$0xff]
  %v625 = vld [vmem:[%s2 + $0xf8] sm:$0xff]
  %v626 = vld [vmem:[%s2 + $0x100] sm:$0xff]
  %v627 = vld [vmem:[%s2 + $0x108] sm:$0xff]
  %v628 = vld [vmem:[%s2 + $0x110] sm:$0xff]
  %v629 = vld [vmem:[%s2 + $0x118] sm:$0xff]
  %v630 = vld [vmem:[%s2 + $0x120] sm:$0xff]
  %v631 = vld [vmem:[%s2 + $0x128] sm:$0xff]
  %v632 = vld [vmem:[%s2 + $0x130] sm:$0xff]
  %v633 = vld [vmem:[%s2 + $0x138] sm:$0xff]
  %v634 = vld [vmem:[%s2 + $0x140] sm:$0xff]
  %v635 = vld [vmem:[%s2 + $0x148] sm:$0xff]
  %v636 = vld [vmem:[%s2 + $0x150] sm:$0xff]
  %v637 = vld [vmem:[%s2 + $0x158] sm:$0xff]
  %v638 = vld [vmem:[%s2 + $0x160] sm:$0xff]
  %v639 = vld [vmem:[%s2 + $0x168] sm:$0xff]
  %v640 = vld [vmem:[%s2 + $0x170] sm:$0xff]
  %v641 = vld [vmem:[%s2 + $0x178] sm:$0xff]
  %v642 = vld [vmem:[%s2 + $0x180] sm:$0xff]
  %v643 = vld [vmem:[%s2 + $0x188] sm:$0xff]
  %v644 = vld [vmem:[%s2 + $0x190] sm:$0xff]
  %v645 = vld [vmem:[%s2 + $0x198] sm:$0xff]
  %v646 = vld [vmem:[%s2 + $0x1a0] sm:$0xff]
  %v647 = vld [vmem:[%s2 + $0x1a8] sm:$0xff]
  %v648 = vld [vmem:[%s2 + $0x1b0] sm:$0xff]
  %v649 = vld [vmem:[%s2 + $0x1b8] sm:$0xff]
  %v650 = vld [vmem:[%s2 + $0x1c0] sm:$0xff]
  %v651 = vld [vmem:[%s2 + $0x1c8] sm:$0xff]
  %v652 = vld [vmem:[%s2 + $0x1d0] sm:$0xff]
  %v653 = vld [vmem:[%s2 + $0x1d8] sm:$0xff]
  %v654 = vld [vmem:[%s2 + $0x1e0] sm:$0xff]
  %v655 = vld [vmem:[%s2 + $0x1e8] sm:$0xff]
  %v656 = vld [vmem:[%s2 + $0x1f0] sm:$0xff]
  %v657 = vld [vmem:[%s2 + $0x1f8] sm:$0xff]
  %v658 = vld [vmem:[%s3] sm:$0xff]
  %v659 = vld [vmem:[%s3 + $0x8] sm:$0xff]
  %v660 = vld [vmem:[%s3 + $0x10] sm:$0xff]
  %v661 = vld [vmem:[%s3 + $0x18] sm:$0xff]
  %v662 = vld [vmem:[%s3 + $0x20] sm:$0xff]
  %v663 = vld [vmem:[%s3 + $0x28] sm:$0xff]
  %v664 = vld [vmem:[%s3 + $0x30] sm:$0xff]
  %v665 = vld [vmem:[%s3 + $0x38] sm:$0xff]
  %v666 = vld [vmem:[%s3 + $0x40] sm:$0xff]
  %v667 = vld [vmem:[%s3 + $0x48] sm:$0xff]
  %v668 = vld [vmem:[%s3 + $0x50] sm:$0xff]
  %v669 = vld [vmem:[%s3 + $0x58] sm:$0xff]
  %v670 = vld [vmem:[%s3 + $0x60] sm:$0xff]
  %v671 = vld [vmem:[%s3 + $0x68] sm:$0xff]
  %v672 = vld [vmem:[%s3 + $0x70] sm:$0xff]
  %v673 = vld [vmem:[%s3 + $0x78] sm:$0xff]
  %v674 = vld [vmem:[%s3 + $0x80] sm:$0xff]
  %v675 = vld [vmem:[%s3 + $0x88] sm:$0xff]
  %v676 = vld [vmem:[%s3 + $0x90] sm:$0xff]
  %v677 = vld [vmem:[%s3 + $0x98] sm:$0xff]
  %v678 = vld [vmem:[%s3 + $0xa0] sm:$0xff]
  %v679 = vld [vmem:[%s3 + $0xa8] sm:$0xff]
  %v680 = vld [vmem:[%s3 + $0xb0] sm:$0xff]
  %v681 = vld [vmem:[%s3 + $0xb8] sm:$0xff]
  %v683 = vcombine.high %v17, %v17
  %v685 = vunpack.c.l.s4 1983009808
  %v686 = vunpack.c.0.s8 %v685
  %v687 = vlaneseq
  %v688 = vshrl.u32 %v687, 7
  %v689 = vsub.s32 %v686, %v688
  %v690 = vrot.slane %v17, %v689
  %v692 = vunpack.c.l.s4 1983009808
  %v693 = vunpack.c.0.s8 %v692
  %v694 = vlaneseq
  %v695 = vshrl.u32 %v694, 7
  %v696 = vsub.s32 %v693, %v695
  %v697 = vrot.slane %v683, %v696
  %v698 = vcombine.high %v690, %v690
  %702 = vmatprep.subr.mxu0 %v19
  %703 = vmatpush1.msra.mxu0 %v18
  %704 = vmatprep.subr.mxu0 %v31
  %705 = vmatpush1.msra.mxu0 %v30
  %706 = vmatprep.subr.mxu0 %v43
  %707 = vmatpush1.msra.mxu0 %v42
  %708 = vmatprep.subr.mxu0 %v55
  %709 = vmatpush1.msra.mxu0 %v54
  %710 = vmatprep.subr.mxu0 %v67
  %711 = vmatpush1.msra.mxu0 %v66
  %712 = vmatprep.subr.mxu0 %v79
  %713 = vmatpush1.msra.mxu0 %v78
  %714 = vmatprep.subr.mxu0 %v91
  %715 = vmatpush1.msra.mxu0 %v90
  %716 = vmatprep.subr.mxu0 %v103
  %717 = vmatpush1.msra.mxu0 %v102
  %718 = vmatprep.subr.mxu0 %v115
  %719 = vmatpush1.msra.mxu0 %v114
  %720 = vmatprep.subr.mxu0 %v127
  %721 = vmatpush1.msra.mxu0 %v126
  %722 = vmatprep.subr.mxu0 %v139
  %723 = vmatpush1.msra.mxu0 %v138
  %724 = vmatprep.subr.mxu0 %v151
  %725 = vmatpush1.msra.mxu0 %v150
  %726 = vmatprep.subr.mxu0 %v163
  %727 = vmatpush1.msra.mxu0 %v162
  %728 = vmatprep.subr.mxu0 %v175
  %729 = vmatpush1.msra.mxu0 %v174
  %730 = vmatprep.subr.mxu0 %v187
  %731 = vmatpush1.msra.mxu0 %v186
  %732 = vmatprep.subr.mxu0 %v199
  %733 = vmatpush1.msra.mxu0 %v198
  %734 = vmatprep.subr.mxu0 %v211
  %735 = vmatpush1.msra.mxu0 %v210
  %736 = vmatprep.subr.mxu0 %v223
  %737 = vmatpush1.msra.mxu0 %v222
  %738 = vmatprep.subr.mxu0 %v235
  %739 = vmatpush1.msra.mxu0 %v234
  %740 = vmatprep.subr.mxu0 %v247
  %741 = vmatpush1.msra.mxu0 %v246
  %742 = vmatprep.subr.mxu0 %v259
  %743 = vmatpush1.msra.mxu0 %v258
  %744 = vmatprep.subr.mxu0 %v271
  %745 = vmatpush1.msra.mxu0 %v270
  %746 = vmatprep.subr.mxu0 %v283
  %747 = vmatpush1.msra.mxu0 %v282
  %748 = vmatprep.subr.mxu0 %v295
  %749 = vmatpush1.msra.mxu0 %v294
  %750 = vmatprep.subr.mxu0 %v307
  %751 = vmatpush1.msra.mxu0 %v306
  %752 = vmatprep.subr.mxu0 %v319
  %753 = vmatpush1.msra.mxu0 %v318
  %754 = vmatprep.subr.mxu0 %v331
  %755 = vmatpush1.msra.mxu0 %v330
  %756 = vmatprep.subr.mxu0 %v343
  %757 = vmatpush1.msra.mxu0 %v342
  %758 = vmatprep.subr.mxu0 %v355
  %759 = vmatpush1.msra.mxu0 %v354
  %760 = vmatprep.subr.mxu0 %v367
  %761 = vmatpush1.msra.mxu0 %v366
  %762 = vmatprep.subr.mxu0 %v379
  %763 = vmatpush1.msra.mxu0 %v378
  %764 = vmatprep.subr.mxu0 %v391
  %765 = vmatpush1.msra.mxu0 %v390
  %766 = vmatprep.mubr.f32.mxu0 %v698
  %767 = vmatmul.mubr.f32.gmra.mrb[0].mxu0 %v690
  %v768 = vpop.f32.mrb[0].mxu0
  %v769 = vadd.f32 0.0, %v768
  %v770 = vpop.f32.mrb[0].mxu0
  %v771 = vadd.f32 0.0, %v770
  %772 = vdwg.mxu0
  %773 = vmatprep.subr.mxu0 %v403
  %774 = vmatpush1.msra.mxu0 %v402
  %775 = vmatprep.subr.mxu0 %v415
  %776 = vmatpush1.msra.mxu0 %v414
  %777 = vmatprep.subr.mxu0 %v427
  %778 = vmatpush1.msra.mxu0 %v426
  %779 = vmatprep.subr.mxu0 %v439
  %780 = vmatpush1.msra.mxu0 %v438
  %781 = vmatprep.subr.mxu0 %v451
  %782 = vmatpush1.msra.mxu0 %v450
  %783 = vmatprep.subr.mxu0 %v463
  %784 = vmatpush1.msra.mxu0 %v462
  %785 = vmatprep.subr.mxu0 %v475
  %786 = vmatpush1.msra.mxu0 %v474
  %787 = vmatprep.subr.mxu0 %v487
  %788 = vmatpush1.msra.mxu0 %v486
  %789 = vmatprep.subr.mxu0 %v499
  %790 = vmatpush1.msra.mxu0 %v498
  %791 = vmatprep.subr.mxu0 %v511
  %792 = vmatpush1.msra.mxu0 %v510
  %793 = vmatprep.subr.mxu0 %v523
  %794 = vmatpush1.msra.mxu0 %v522
  %795 = vmatprep.subr.mxu0 %v535
  %796 = vmatpush1.msra.mxu0 %v534
  %797 = vmatprep.subr.mxu0 %v547
  %798 = vmatpush1.msra.mxu0 %v546
  %799 = vmatprep.subr.mxu0 %v559
  %800 = vmatpush1.msra.mxu0 %v558
  %801 = vmatprep.subr.mxu0 %v571
  %802 = vmatpush1.msra.mxu0 %v570
  %803 = vmatprep.subr.mxu0 %v583
  %804 = vmatpush1.msra.mxu0 %v582
  %805 = vmatprep.subr.mxu0 0.0
  %806 = vmatpush1.msra.mxu0 0.0
  %807 = vmatprep.subr.mxu0 0.0
  %808 = vmatpush1.msra.mxu0 0.0
  %809 = vmatprep.subr.mxu0 0.0
  %810 = vmatpush1.msra.mxu0 0.0
  %811 = vmatprep.subr.mxu0 0.0
  %812 = vmatpush1.msra.mxu0 0.0
  %813 = vmatprep.subr.mxu0 0.0
  %814 = vmatpush1.msra.mxu0 0.0
  %815 = vmatprep.subr.mxu0 0.0
  %816 = vmatpush1.msra.mxu0 0.0
  %817 = vmatprep.subr.mxu0 0.0
  %818 = vmatpush1.msra.mxu0 0.0
  %819 = vmatprep.subr.mxu0 0.0
  %820 = vmatpush1.msra.mxu0 0.0
  %821 = vmatprep.subr.mxu0 0.0
  %822 = vmatpush1.msra.mxu0 0.0
  %823 = vmatprep.subr.mxu0 0.0
  %824 = vmatpush1.msra.mxu0 0.0
  %825 = vmatprep.subr.mxu0 0.0
  %826 = vmatpush1.msra.mxu0 0.0
  %827 = vmatprep.subr.mxu0 0.0
  %828 = vmatpush1.msra.mxu0 0.0
  %829 = vmatprep.subr.mxu0 0.0
  %830 = vmatpush1.msra.mxu0 0.0
  %831 = vmatprep.subr.mxu0 0.0
  %832 = vmatpush1.msra.mxu0 0.0
  %833 = vmatprep.subr.mxu0 0.0
  %834 = vmatpush1.msra.mxu0 0.0
  %835 = vmatprep.subr.mxu0 0.0
  %836 = vmatpush1.msra.mxu0 0.0
  %837 = vmatprep.mubr.f32.mxu0 0.0
  %838 = vmatmul.mubr.f32.gmra.mrb[0].mxu0 %v697
  %v839 = vpop.f32.mrb[0].mxu0
  %v840 = vadd.f32 %v769, %v839
  %v841 = vpop.f32.mrb[0].mxu0
  %v842 = vadd.f32 %v771, %v841
  %843 = vdwg.mxu0
  %844 = vmatprep.subr.mxu0 %v21
  %845 = vmatpush1.msra.mxu0 %v20
  %846 = vmatprep.subr.mxu0 %v33
  %847 = vmatpush1.msra.mxu0 %v32
  %848 = vmatprep.subr.mxu0 %v45
  %849 = vmatpush1.msra.mxu0 %v44
  %850 = vmatprep.subr.mxu0 %v57
  %851 = vmatpush1.msra.mxu0 %v56
  %852 = vmatprep.subr.mxu0 %v69
  %853 = vmatpush1.msra.mxu0 %v68
  %854 = vmatprep.subr.mxu0 %v81
  %855 = vmatpush1.msra.mxu0 %v80
  %856 = vmatprep.subr.mxu0 %v93
  %857 = vmatpush1.msra.mxu0 %v92
  %858 = vmatprep.subr.mxu0 %v105
  %859 = vmatpush1.msra.mxu0 %v104
  %860 = vmatprep.subr.mxu0 %v117
  %861 = vmatpush1.msra.mxu0 %v116
  %862 = vmatprep.subr.mxu0 %v129
  %863 = vmatpush1.msra.mxu0 %v128
  %864 = vmatprep.subr.mxu0 %v141
  %865 = vmatpush1.msra.mxu0 %v140
  %866 = vmatprep.subr.mxu0 %v153
  %867 = vmatpush1.msra.mxu0 %v152
  %868 = vmatprep.subr.mxu0 %v165
  %869 = vmatpush1.msra.mxu0 %v164
  %870 = vmatprep.subr.mxu0 %v177
  %871 = vmatpush1.msra.mxu0 %v176
  %872 = vmatprep.subr.mxu0 %v189
  %873 = vmatpush1.msra.mxu0 %v188
  %874 = vmatprep.subr.mxu0 %v201
  %875 = vmatpush1.msra.mxu0 %v200
  %876 = vmatprep.subr.mxu0 %v213
  %877 = vmatpush1.msra.mxu0 %v212
  %878 = vmatprep.subr.mxu0 %v225
  %879 = vmatpush1.msra.mxu0 %v224
  %880 = vmatprep.subr.mxu0 %v237
  %881 = vmatpush1.msra.mxu0 %v236
  %882 = vmatprep.subr.mxu0 %v249
  %883 = vmatpush1.msra.mxu0 %v248
  %884 = vmatprep.subr.mxu0 %v261
  %885 = vmatpush1.msra.mxu0 %v260
  %886 = vmatprep.subr.mxu0 %v273
  %887 = vmatpush1.msra.mxu0 %v272
  %888 = vmatprep.subr.mxu0 %v285
  %889 = vmatpush1.msra.mxu0 %v284
  %890 = vmatprep.subr.mxu0 %v297
  %891 = vmatpush1.msra.mxu0 %v296
  %892 = vmatprep.subr.mxu0 %v309
  %893 = vmatpush1.msra.mxu0 %v308
  %894 = vmatprep.subr.mxu0 %v321
  %895 = vmatpush1.msra.mxu0 %v320
  %896 = vmatprep.subr.mxu0 %v333
  %897 = vmatpush1.msra.mxu0 %v332
  %898 = vmatprep.subr.mxu0 %v345
  %899 = vmatpush1.msra.mxu0 %v344
  %900 = vmatprep.subr.mxu0 %v357
  %901 = vmatpush1.msra.mxu0 %v356
  %902 = vmatprep.subr.mxu0 %v369
  %903 = vmatpush1.msra.mxu0 %v368
  %904 = vmatprep.subr.mxu0 %v381
  %905 = vmatpush1.msra.mxu0 %v380
  %906 = vmatprep.subr.mxu0 %v393
  %907 = vmatpush1.msra.mxu0 %v392
  %908 = vmatprep.mubr.f32.mxu0 %v698
  %909 = vmatmul.mubr.f32.gmra.mrb[0].mxu0 %v690
  %v910 = vpop.f32.mrb[0].mxu0
  %v911 = vadd.f32 0.0, %v910
  %v912 = vpop.f32.mrb[0].mxu0
  %v913 = vadd.f32 0.0, %v912
  %914 = vdwg.mxu0
  %915 = vmatprep.subr.mxu0 %v405
  %916 = vmatpush1.msra.mxu0 %v404
  %917 = vmatprep.subr.mxu0 %v417
  %918 = vmatpush1.msra.mxu0 %v416
  %919 = vmatprep.subr.mxu0 %v429
  %920 = vmatpush1.msra.mxu0 %v428
  %921 = vmatprep.subr.mxu0 %v441
  %922 = vmatpush1.msra.mxu0 %v440
  %923 = vmatprep.subr.mxu0 %v453
  %924 = vmatpush1.msra.mxu0 %v452
  %925 = vmatprep.subr.mxu0 %v465
  %926 = vmatpush1.msra.mxu0 %v464
  %927 = vmatprep.subr.mxu0 %v477
  %928 = vmatpush1.msra.mxu0 %v476
  %929 = vmatprep.subr.mxu0 %v489
  %930 = vmatpush1.msra.mxu0 %v488
  %931 = vmatprep.subr.mxu0 %v501
  %932 = vmatpush1.msra.mxu0 %v500
  %933 = vmatprep.subr.mxu0 %v513
  %934 = vmatpush1.msra.mxu0 %v512
  %935 = vmatprep.subr.mxu0 %v525
  %936 = vmatpush1.msra.mxu0 %v524
  %937 = vmatprep.subr.mxu0 %v537
  %938 = vmatpush1.msra.mxu0 %v536
  %939 = vmatprep.subr.mxu0 %v549
  %940 = vmatpush1.msra.mxu0 %v548
  %941 = vmatprep.subr.mxu0 %v561
  %942 = vmatpush1.msra.mxu0 %v560
  %943 = vmatprep.subr.mxu0 %v573
  %944 = vmatpush1.msra.mxu0 %v572
  %945 = vmatprep.subr.mxu0 %v585
  %946 = vmatpush1.msra.mxu0 %v584
  %947 = vmatprep.subr.mxu0 0.0
  %948 = vmatpush1.msra.mxu0 0.0
  %949 = vmatprep.subr.mxu0 0.0
  %950 = vmatpush1.msra.mxu0 0.0
  %951 = vmatprep.subr.mxu0 0.0
  %952 = vmatpush1.msra.mxu0 0.0
  %953 = vmatprep.subr.mxu0 0.0
  %954 = vmatpush1.msra.mxu0 0.0
  %955 = vmatprep.subr.mxu0 0.0
  %956 = vmatpush1.msra.mxu0 0.0
  %957 = vmatprep.subr.mxu0 0.0
  %958 = vmatpush1.msra.mxu0 0.0
  %959 = vmatprep.subr.mxu0 0.0
  %960 = vmatpush1.msra.mxu0 0.0
  %961 = vmatprep.subr.mxu0 0.0
  %962 = vmatpush1.msra.mxu0 0.0
  %963 = vmatprep.subr.mxu0 0.0
  %964 = vmatpush1.msra.mxu0 0.0
  %965 = vmatprep.subr.mxu0 0.0
  %966 = vmatpush1.msra.mxu0 0.0
  %967 = vmatprep.subr.mxu0 0.0
  %968 = vmatpush1.msra.mxu0 0.0
  %969 = vmatprep.subr.mxu0 0.0
  %970 = vmatpush1.msra.mxu0 0.0
  %971 = vmatprep.subr.mxu0 0.0
  %972 = vmatpush1.msra.mxu0 0.0
  %973 = vmatprep.subr.mxu0 0.0
  %974 = vmatpush1.msra.mxu0 0.0
  %975 = vmatprep.subr.mxu0 0.0
  %976 = vmatpush1.msra.mxu0 0.0
  %977 = vmatprep.subr.mxu0 0.0
  %978 = vmatpush1.msra.mxu0 0.0
  %979 = vmatprep.mubr.f32.mxu0 0.0
  %980 = vmatmul.mubr.f32.gmra.mrb[0].mxu0 %v697
  %v981 = vpop.f32.mrb[0].mxu0
  %v982 = vadd.f32 %v911, %v981
  %v983 = vpop.f32.mrb[0].mxu0
  %v984 = vadd.f32 %v913, %v983
  %985 = vdwg.mxu0
  %986 = vmatprep.subr.mxu0 %v23
  %987 = vmatpush1.msra.mxu0 %v22
  %988 = vmatprep.subr.mxu0 %v35
  %989 = vmatpush1.msra.mxu0 %v34
  %990 = vmatprep.subr.mxu0 %v47
  %991 = vmatpush1.msra.mxu0 %v46
  %992 = vmatprep.subr.mxu0 %v59
  %993 = vmatpush1.msra.mxu0 %v58
  %994 = vmatprep.subr.mxu0 %v71
  %995 = vmatpush1.msra.mxu0 %v70
  %996 = vmatprep.subr.mxu0 %v83
  %997 = vmatpush1.msra.mxu0 %v82
  %998 = vmatprep.subr.mxu0 %v95
  %999 = vmatpush1.msra.mxu0 %v94
  %1000 = vmatprep.subr.mxu0 %v107
  %1001 = vmatpush1.msra.mxu0 %v106
  %1002 = vmatprep.subr.mxu0 %v119
  %1003 = vmatpush1.msra.mxu0 %v118
  %1004 = vmatprep.subr.mxu0 %v131
  %1005 = vmatpush1.msra.mxu0 %v130
  %1006 = vmatprep.subr.mxu0 %v143
  %1007 = vmatpush1.msra.mxu0 %v142
  %1008 = vmatprep.subr.mxu0 %v155
  %1009 = vmatpush1.msra.mxu0 %v154
  %1010 = vmatprep.subr.mxu0 %v167
  %1011 = vmatpush1.msra.mxu0 %v166
  %1012 = vmatprep.subr.mxu0 %v179
  %1013 = vmatpush1.msra.mxu0 %v178
  %1014 = vmatprep.subr.mxu0 %v191
  %1015 = vmatpush1.msra.mxu0 %v190
  %1016 = vmatprep.subr.mxu0 %v203
  %1017 = vmatpush1.msra.mxu0 %v202
  %1018 = vmatprep.subr.mxu0 %v215
  %1019 = vmatpush1.msra.mxu0 %v214
  %1020 = vmatprep.subr.mxu0 %v227
  %1021 = vmatpush1.msra.mxu0 %v226
  %1022 = vmatprep.subr.mxu0 %v239
  %1023 = vmatpush1.msra.mxu0 %v238
  %1024 = vmatprep.subr.mxu0 %v251
  %1025 = vmatpush1.msra.mxu0 %v250
  %1026 = vmatprep.subr.mxu0 %v263
  %1027 = vmatpush1.msra.mxu0 %v262
  %1028 = vmatprep.subr.mxu0 %v275
  %1029 = vmatpush1.msra.mxu0 %v274
  %1030 = vmatprep.subr.mxu0 %v287
  %1031 = vmatpush1.msra.mxu0 %v286
  %1032 = vmatprep.subr.mxu0 %v299
  %1033 = vmatpush1.msra.mxu0 %v298
  %1034 = vmatprep.subr.mxu0 %v311
  %1035 = vmatpush1.msra.mxu0 %v310
  %1036 = vmatprep.subr.mxu0 %v323
  %1037 = vmatpush1.msra.mxu0 %v322
  %1038 = vmatprep.subr.mxu0 %v335
  %1039 = vmatpush1.msra.mxu0 %v334
  %1040 = vmatprep.subr.mxu0 %v347
  %1041 = vmatpush1.msra.mxu0 %v346
  %1042 = vmatprep.subr.mxu0 %v359
  %1043 = vmatpush1.msra.mxu0 %v358
  %1044 = vmatprep.subr.mxu0 %v371
  %1045 = vmatpush1.msra.mxu0 %v370
  %1046 = vmatprep.subr.mxu0 %v383
  %1047 = vmatpush1.msra.mxu0 %v382
  %1048 = vmatprep.subr.mxu0 %v395
  %1049 = vmatpush1.msra.mxu0 %v394
  %1050 = vmatprep.mubr.f32.mxu0 %v698
  %1051 = vmatmul.mubr.f32.gmra.mrb[0].mxu0 %v690
  %v1052 = vpop.f32.mrb[0].mxu0
  %v1053 = vadd.f32 0.0, %v1052
  %v1054 = vpop.f32.mrb[0].mxu0
  %v1055 = vadd.f32 0.0, %v1054
  %1056 = vdwg.mxu0
  %1057 = vmatprep.subr.mxu0 %v407
  %1058 = vmatpush1.msra.mxu0 %v406
  %1059 = vmatprep.subr.mxu0 %v419
  %1060 = vmatpush1.msra.mxu0 %v418
  %1061 = vmatprep.subr.mxu0 %v431
  %1062 = vmatpush1.msra.mxu0 %v430
  %1063 = vmatprep.subr.mxu0 %v443
  %1064 = vmatpush1.msra.mxu0 %v442
  %1065 = vmatprep.subr.mxu0 %v455
  %1066 = vmatpush1.msra.mxu0 %v454
  %1067 = vmatprep.subr.mxu0 %v467
  %1068 = vmatpush1.msra.mxu0 %v466
  %1069 = vmatprep.subr.mxu0 %v479
  %1070 = vmatpush1.msra.mxu0 %v478
  %1071 = vmatprep.subr.mxu0 %v491
  %1072 = vmatpush1.msra.mxu0 %v490
  %1073 = vmatprep.subr.mxu0 %v503
  %1074 = vmatpush1.msra.mxu0 %v502
  %1075 = vmatprep.subr.mxu0 %v515
  %1076 = vmatpush1.msra.mxu0 %v514
  %1077 = vmatprep.subr.mxu0 %v527
  %1078 = vmatpush1.msra.mxu0 %v526
  %1079 = vmatprep.subr.mxu0 %v539
  %1080 = vmatpush1.msra.mxu0 %v538
  %1081 = vmatprep.subr.mxu0 %v551
  %1082 = vmatpush1.msra.mxu0 %v550
  %1083 = vmatprep.subr.mxu0 %v563
  %1084 = vmatpush1.msra.mxu0 %v562
  %1085 = vmatprep.subr.mxu0 %v575
  %1086 = vmatpush1.msra.mxu0 %v574
  %1087 = vmatprep.subr.mxu0 %v587
  %1088 = vmatpush1.msra.mxu0 %v586
  %1089 = vmatprep.subr.mxu0 0.0
  %1090 = vmatpush1.msra.mxu0 0.0
  %1091 = vmatprep.subr.mxu0 0.0
  %1092 = vmatpush1.msra.mxu0 0.0
  %1093 = vmatprep.subr.mxu0 0.0
  %1094 = vmatpush1.msra.mxu0 0.0
  %1095 = vmatprep.subr.mxu0 0.0
  %1096 = vmatpush1.msra.mxu0 0.0
  %1097 = vmatprep.subr.mxu0 0.0
  %1098 = vmatpush1.msra.mxu0 0.0
  %1099 = vmatprep.subr.mxu0 0.0
  %1100 = vmatpush1.msra.mxu0 0.0
  %1101 = vmatprep.subr.mxu0 0.0
  %1102 = vmatpush1.msra.mxu0 0.0
  %1103 = vmatprep.subr.mxu0 0.0
  %1104 = vmatpush1.msra.mxu0 0.0
  %1105 = vmatprep.subr.mxu0 0.0
  %1106 = vmatpush1.msra.mxu0 0.0
  %1107 = vmatprep.subr.mxu0 0.0
  %1108 = vmatpush1.msra.mxu0 0.0
  %1109 = vmatprep.subr.mxu0 0.0
  %1110 = vmatpush1.msra.mxu0 0.0
  %1111 = vmatprep.subr.mxu0 0.0
  %1112 = vmatpush1.msra.mxu0 0.0
  %1113 = vmatprep.subr.mxu0 0.0
  %1114 = vmatpush1.msra.mxu0 0.0
  %1115 = vmatprep.subr.mxu0 0.0
  %1116 = vmatpush1.msra.mxu0 0.0
  %1117 = vmatprep.subr.mxu0 0.0
  %1118 = vmatpush1.msra.mxu0 0.0
  %1119 = vmatprep.subr.mxu0 0.0
  %1120 = vmatpush1.msra.mxu0 0.0
  %1121 = vmatprep.mubr.f32.mxu0 0.0
  %1122 = vmatmul.mubr.f32.gmra.mrb[0].mxu0 %v697
  %v1123 = vpop.f32.mrb[0].mxu0
  %v1124 = vadd.f32 %v1053, %v1123
  %v1125 = vpop.f32.mrb[0].mxu0
  %v1126 = vadd.f32 %v1055, %v1125
  %1127 = vdwg.mxu0
  %1128 = vmatprep.subr.mxu0 %v25
  %1129 = vmatpush1.msra.mxu0 %v24
  %1130 = vmatprep.subr.mxu0 %v37
  %1131 = vmatpush1.msra.mxu0 %v36
  %1132 = vmatprep.subr.mxu0 %v49
  %1133 = vmatpush1.msra.mxu0 %v48
  %1134 = vmatprep.subr.mxu0 %v61
  %1135 = vmatpush1.msra.mxu0 %v60
  %1136 = vmatprep.subr.mxu0 %v73
  %1137 = vmatpush1.msra.mxu0 %v72
  %1138 = vmatprep.subr.mxu0 %v85
  %1139 = vmatpush1.msra.mxu0 %v84
  %1140 = vmatprep.subr.mxu0 %v97
  %1141 = vmatpush1.msra.mxu0 %v96
  %1142 = vmatprep.subr.mxu0 %v109
  %1143 = vmatpush1.msra.mxu0 %v108
  %1144 = vmatprep.subr.mxu0 %v121
  %1145 = vmatpush1.msra.mxu0 %v120
  %1146 = vmatprep.subr.mxu0 %v133
  %1147 = vmatpush1.msra.mxu0 %v132
  %1148 = vmatprep.subr.mxu0 %v145
  %1149 = vmatpush1.msra.mxu0 %v144
  %1150 = vmatprep.subr.mxu0 %v157
  %1151 = vmatpush1.msra.mxu0 %v156
  %1152 = vmatprep.subr.mxu0 %v169
  %1153 = vmatpush1.msra.mxu0 %v168
  %1154 = vmatprep.subr.mxu0 %v181
  %1155 = vmatpush1.msra.mxu0 %v180
  %1156 = vmatprep.subr.mxu0 %v193
  %1157 = vmatpush1.msra.mxu0 %v192
  %1158 = vmatprep.subr.mxu0 %v205
  %1159 = vmatpush1.msra.mxu0 %v204
  %1160 = vmatprep.subr.mxu0 %v217
  %1161 = vmatpush1.msra.mxu0 %v216
  %1162 = vmatprep.subr.mxu0 %v229
  %1163 = vmatpush1.msra.mxu0 %v228
  %1164 = vmatprep.subr.mxu0 %v241
  %1165 = vmatpush1.msra.mxu0 %v240
  %1166 = vmatprep.subr.mxu0 %v253
  %1167 = vmatpush1.msra.mxu0 %v252
  %1168 = vmatprep.subr.mxu0 %v265
  %1169 = vmatpush1.msra.mxu0 %v264
  %1170 = vmatprep.subr.mxu0 %v277
  %1171 = vmatpush1.msra.mxu0 %v276
  %1172 = vmatprep.subr.mxu0 %v289
  %1173 = vmatpush1.msra.mxu0 %v288
  %1174 = vmatprep.subr.mxu0 %v301
  %1175 = vmatpush1.msra.mxu0 %v300
  %1176 = vmatprep.subr.mxu0 %v313
  %1177 = vmatpush1.msra.mxu0 %v312
  %1178 = vmatprep.subr.mxu0 %v325
  %1179 = vmatpush1.msra.mxu0 %v324
  %1180 = vmatprep.subr.mxu0 %v337
  %1181 = vmatpush1.msra.mxu0 %v336
  %1182 = vmatprep.subr.mxu0 %v349
  %1183 = vmatpush1.msra.mxu0 %v348
  %1184 = vmatprep.subr.mxu0 %v361
  %1185 = vmatpush1.msra.mxu0 %v360
  %1186 = vmatprep.subr.mxu0 %v373
  %1187 = vmatpush1.msra.mxu0 %v372
  %1188 = vmatprep.subr.mxu0 %v385
  %1189 = vmatpush1.msra.mxu0 %v384
  %1190 = vmatprep.subr.mxu0 %v397
  %1191 = vmatpush1.msra.mxu0 %v396
  %1192 = vmatprep.mubr.f32.mxu0 %v698
  %1193 = vmatmul.mubr.f32.gmra.mrb[0].mxu0 %v690
  %v1194 = vpop.f32.mrb[0].mxu0
  %v1195 = vadd.f32 0.0, %v1194
  %v1196 = vpop.f32.mrb[0].mxu0
  %v1197 = vadd.f32 0.0, %v1196
  %1198 = vdwg.mxu0
  %1199 = vmatprep.subr.mxu0 %v409
  %1200 = vmatpush1.msra.mxu0 %v408
  %1201 = vmatprep.subr.mxu0 %v421
  %1202 = vmatpush1.msra.mxu0 %v420
  %1203 = vmatprep.subr.mxu0 %v433
  %1204 = vmatpush1.msra.mxu0 %v432
  %1205 = vmatprep.subr.mxu0 %v445
  %1206 = vmatpush1.msra.mxu0 %v444
  %1207 = vmatprep.subr.mxu0 %v457
  %1208 = vmatpush1.msra.mxu0 %v456
  %1209 = vmatprep.subr.mxu0 %v469
  %1210 = vmatpush1.msra.mxu0 %v468
  %1211 = vmatprep.subr.mxu0 %v481
  %1212 = vmatpush1.msra.mxu0 %v480
  %1213 = vmatprep.subr.mxu0 %v493
  %1214 = vmatpush1.msra.mxu0 %v492
  %1215 = vmatprep.subr.mxu0 %v505
  %1216 = vmatpush1.msra.mxu0 %v504
  %1217 = vmatprep.subr.mxu0 %v517
  %1218 = vmatpush1.msra.mxu0 %v516
  %1219 = vmatprep.subr.mxu0 %v529
  %1220 = vmatpush1.msra.mxu0 %v528
  %1221 = vmatprep.subr.mxu0 %v541
  %1222 = vmatpush1.msra.mxu0 %v540
  %1223 = vmatprep.subr.mxu0 %v553
  %1224 = vmatpush1.msra.mxu0 %v552
  %1225 = vmatprep.subr.mxu0 %v565
  %1226 = vmatpush1.msra.mxu0 %v564
  %1227 = vmatprep.subr.mxu0 %v577
  %1228 = vmatpush1.msra.mxu0 %v576
  %1229 = vmatprep.subr.mxu0 %v589
  %1230 = vmatpush1.msra.mxu0 %v588
  %1231 = vmatprep.subr.mxu0 0.0
  %1232 = vmatpush1.msra.mxu0 0.0
  %1233 = vmatprep.subr.mxu0 0.0
  %1234 = vmatpush1.msra.mxu0 0.0
  %1235 = vmatprep.subr.mxu0 0.0
  %1236 = vmatpush1.msra.mxu0 0.0
  %1237 = vmatprep.subr.mxu0 0.0
  %1238 = vmatpush1.msra.mxu0 0.0
  %1239 = vmatprep.subr.mxu0 0.0
  %1240 = vmatpush1.msra.mxu0 0.0
  %1241 = vmatprep.subr.mxu0 0.0
  %1242 = vmatpush1.msra.mxu0 0.0
  %1243 = vmatprep.subr.mxu0 0.0
  %1244 = vmatpush1.msra.mxu0 0.0
  %1245 = vmatprep.subr.mxu0 0.0
  %1246 = vmatpush1.msra.mxu0 0.0
  %1247 = vmatprep.subr.mxu0 0.0
  %1248 = vmatpush1.msra.mxu0 0.0
  %1249 = vmatprep.subr.mxu0 0.0
  %1250 = vmatpush1.msra.mxu0 0.0
  %1251 = vmatprep.subr.mxu0 0.0
  %1252 = vmatpush1.msra.mxu0 0.0
  %1253 = vmatprep.subr.mxu0 0.0
  %1254 = vmatpush1.msra.mxu0 0.0
  %1255 = vmatprep.subr.mxu0 0.0
  %1256 = vmatpush1.msra.mxu0 0.0
  %1257 = vmatprep.subr.mxu0 0.0
  %1258 = vmatpush1.msra.mxu0 0.0
  %1259 = vmatprep.subr.mxu0 0.0
  %1260 = vmatpush1.msra.mxu0 0.0
  %1261 = vmatprep.subr.mxu0 0.0
  %1262 = vmatpush1.msra.mxu0 0.0
  %1263 = vmatprep.mubr.f32.mxu0 0.0
  %1264 = vmatmul.mubr.f32.gmra.mrb[0].mxu0 %v697
  %v1265 = vpop.f32.mrb[0].mxu0
  %v1266 = vadd.f32 %v1195, %v1265
  %v1267 = vpop.f32.mrb[0].mxu0
  %v1268 = vadd.f32 %v1197, %v1267
  %1269 = vdwg.mxu0
  %1270 = vmatprep.subr.mxu0 %v27
  %1271 = vmatpush1.msra.mxu0 %v26
  %1272 = vmatprep.subr.mxu0 %v39
  %1273 = vmatpush1.msra.mxu0 %v38
  %1274 = vmatprep.subr.mxu0 %v51
  %1275 = vmatpush1.msra.mxu0 %v50
  %1276 = vmatprep.subr.mxu0 %v63
  %1277 = vmatpush1.msra.mxu0 %v62
  %1278 = vmatprep.subr.mxu0 %v75
  %1279 = vmatpush1.msra.mxu0 %v74
  %1280 = vmatprep.subr.mxu0 %v87
  %1281 = vmatpush1.msra.mxu0 %v86
  %1282 = vmatprep.subr.mxu0 %v99
  %1283 = vmatpush1.msra.mxu0 %v98
  %1284 = vmatprep.subr.mxu0 %v111
  %1285 = vmatpush1.msra.mxu0 %v110
  %1286 = vmatprep.subr.mxu0 %v123
  %1287 = vmatpush1.msra.mxu0 %v122
  %1288 = vmatprep.subr.mxu0 %v135
  %1289 = vmatpush1.msra.mxu0 %v134
  %1290 = vmatprep.subr.mxu0 %v147
  %1291 = vmatpush1.msra.mxu0 %v146
  %1292 = vmatprep.subr.mxu0 %v159
  %1293 = vmatpush1.msra.mxu0 %v158
  %1294 = vmatprep.subr.mxu0 %v171
  %1295 = vmatpush1.msra.mxu0 %v170
  %1296 = vmatprep.subr.mxu0 %v183
  %1297 = vmatpush1.msra.mxu0 %v182
  %1298 = vmatprep.subr.mxu0 %v195
  %1299 = vmatpush1.msra.mxu0 %v194
  %1300 = vmatprep.subr.mxu0 %v207
  %1301 = vmatpush1.msra.mxu0 %v206
  %1302 = vmatprep.subr.mxu0 %v219
  %1303 = vmatpush1.msra.mxu0 %v218
  %1304 = vmatprep.subr.mxu0 %v231
  %1305 = vmatpush1.msra.mxu0 %v230
  %1306 = vmatprep.subr.mxu0 %v243
  %1307 = vmatpush1.msra.mxu0 %v242
  %1308 = vmatprep.subr.mxu0 %v255
  %1309 = vmatpush1.msra.mxu0 %v254
  %1310 = vmatprep.subr.mxu0 %v267
  %1311 = vmatpush1.msra.mxu0 %v266
  %1312 = vmatprep.subr.mxu0 %v279
  %1313 = vmatpush1.msra.mxu0 %v278
  %1314 = vmatprep.subr.mxu0 %v291
  %1315 = vmatpush1.msra.mxu0 %v290
  %1316 = vmatprep.subr.mxu0 %v303
  %1317 = vmatpush1.msra.mxu0 %v302
  %1318 = vmatprep.subr.mxu0 %v315
  %1319 = vmatpush1.msra.mxu0 %v314
  %1320 = vmatprep.subr.mxu0 %v327
  %1321 = vmatpush1.msra.mxu0 %v326
  %1322 = vmatprep.subr.mxu0 %v339
  %1323 = vmatpush1.msra.mxu0 %v338
  %1324 = vmatprep.subr.mxu0 %v351
  %1325 = vmatpush1.msra.mxu0 %v350
  %1326 = vmatprep.subr.mxu0 %v363
  %1327 = vmatpush1.msra.mxu0 %v362
  %1328 = vmatprep.subr.mxu0 %v375
  %1329 = vmatpush1.msra.mxu0 %v374
  %1330 = vmatprep.subr.mxu0 %v387
  %1331 = vmatpush1.msra.mxu0 %v386
  %1332 = vmatprep.subr.mxu0 %v399
  %1333 = vmatpush1.msra.mxu0 %v398
  %1334 = vmatprep.mubr.f32.mxu0 %v698
  %1335 = vmatmul.mubr.f32.gmra.mrb[0].mxu0 %v690
  %v1336 = vpop.f32.mrb[0].mxu0
  %v1337 = vadd.f32 0.0, %v1336
  %v1338 = vpop.f32.mrb[0].mxu0
  %v1339 = vadd.f32 0.0, %v1338
  %1340 = vdwg.mxu0
  %1341 = vmatprep.subr.mxu0 %v411
  %1342 = vmatpush1.msra.mxu0 %v410
  %1343 = vmatprep.subr.mxu0 %v423
  %1344 = vmatpush1.msra.mxu0 %v422
  %1345 = vmatprep.subr.mxu0 %v435
  %1346 = vmatpush1.msra.mxu0 %v434
  %1347 = vmatprep.subr.mxu0 %v447
  %1348 = vmatpush1.msra.mxu0 %v446
  %1349 = vmatprep.subr.mxu0 %v459
  %1350 = vmatpush1.msra.mxu0 %v458
  %1351 = vmatprep.subr.mxu0 %v471
  %1352 = vmatpush1.msra.mxu0 %v470
  %1353 = vmatprep.subr.mxu0 %v483
  %1354 = vmatpush1.msra.mxu0 %v482
  %1355 = vmatprep.subr.mxu0 %v495
  %1356 = vmatpush1.msra.mxu0 %v494
  %1357 = vmatprep.subr.mxu0 %v507
  %1358 = vmatpush1.msra.mxu0 %v506
  %1359 = vmatprep.subr.mxu0 %v519
  %1360 = vmatpush1.msra.mxu0 %v518
  %1361 = vmatprep.subr.mxu0 %v531
  %1362 = vmatpush1.msra.mxu0 %v530
  %1363 = vmatprep.subr.mxu0 %v543
  %1364 = vmatpush1.msra.mxu0 %v542
  %1365 = vmatprep.subr.mxu0 %v555
  %1366 = vmatpush1.msra.mxu0 %v554
  %1367 = vmatprep.subr.mxu0 %v567
  %1368 = vmatpush1.msra.mxu0 %v566
  %1369 = vmatprep.subr.mxu0 %v579
  %1370 = vmatpush1.msra.mxu0 %v578
  %1371 = vmatprep.subr.mxu0 %v591
  %1372 = vmatpush1.msra.mxu0 %v590
  %1373 = vmatprep.subr.mxu0 0.0
  %1374 = vmatpush1.msra.mxu0 0.0
  %1375 = vmatprep.subr.mxu0 0.0
  %1376 = vmatpush1.msra.mxu0 0.0
  %1377 = vmatprep.subr.mxu0 0.0
  %1378 = vmatpush1.msra.mxu0 0.0
  %1379 = vmatprep.subr.mxu0 0.0
  %1380 = vmatpush1.msra.mxu0 0.0
  %1381 = vmatprep.subr.mxu0 0.0
  %1382 = vmatpush1.msra.mxu0 0.0
  %1383 = vmatprep.subr.mxu0 0.0
  %1384 = vmatpush1.msra.mxu0 0.0
  %1385 = vmatprep.subr.mxu0 0.0
  %1386 = vmatpush1.msra.mxu0 0.0
  %1387 = vmatprep.subr.mxu0 0.0
  %1388 = vmatpush1.msra.mxu0 0.0
  %1389 = vmatprep.subr.mxu0 0.0
  %1390 = vmatpush1.msra.mxu0 0.0
  %1391 = vmatprep.subr.mxu0 0.0
  %1392 = vmatpush1.msra.mxu0 0.0
  %1393 = vmatprep.subr.mxu0 0.0
  %1394 = vmatpush1.msra.mxu0 0.0
  %1395 = vmatprep.subr.mxu0 0.0
  %1396 = vmatpush1.msra.mxu0 0.0
  %1397 = vmatprep.subr.mxu0 0.0
  %1398 = vmatpush1.msra.mxu0 0.0
  %1399 = vmatprep.subr.mxu0 0.0
  %1400 = vmatpush1.msra.mxu0 0.0
  %1401 = vmatprep.subr.mxu0 0.0
  %1402 = vmatpush1.msra.mxu0 0.0
  %1403 = vmatprep.subr.mxu0 0.0
  %1404 = vmatpush1.msra.mxu0 0.0
  %1405 = vmatprep.mubr.f32.mxu0 0.0
  %1406 = vmatmul.mubr.f32.gmra.mrb[0].mxu0 %v697
  %v1407 = vpop.f32.mrb[0].mxu0
  %v1408 = vadd.f32 %v1337, %v1407
  %v1409 = vpop.f32.mrb[0].mxu0
  %v1410 = vadd.f32 %v1339, %v1409
  %1411 = vdwg.mxu0
  %1412 = vmatprep.subr.mxu0 %v29
  %1413 = vmatpush1.msra.mxu0 %v28
  %1414 = vmatprep.subr.mxu0 %v41
  %1415 = vmatpush1.msra.mxu0 %v40
  %1416 = vmatprep.subr.mxu0 %v53
  %1417 = vmatpush1.msra.mxu0 %v52
  %1418 = vmatprep.subr.mxu0 %v65
  %1419 = vmatpush1.msra.mxu0 %v64
  %1420 = vmatprep.subr.mxu0 %v77
  %1421 = vmatpush1.msra.mxu0 %v76
  %1422 = vmatprep.subr.mxu0 %v89
  %1423 = vmatpush1.msra.mxu0 %v88
  %1424 = vmatprep.subr.mxu0 %v101
  %1425 = vmatpush1.msra.mxu0 %v100
  %1426 = vmatprep.subr.mxu0 %v113
  %1427 = vmatpush1.msra.mxu0 %v112
  %1428 = vmatprep.subr.mxu0 %v125
  %1429 = vmatpush1.msra.mxu0 %v124
  %1430 = vmatprep.subr.mxu0 %v137
  %1431 = vmatpush1.msra.mxu0 %v136
  %1432 = vmatprep.subr.mxu0 %v149
  %1433 = vmatpush1.msra.mxu0 %v148
  %1434 = vmatprep.subr.mxu0 %v161
  %1435 = vmatpush1.msra.mxu0 %v160
  %1436 = vmatprep.subr.mxu0 %v173
  %1437 = vmatpush1.msra.mxu0 %v172
  %1438 = vmatprep.subr.mxu0 %v185
  %1439 = vmatpush1.msra.mxu0 %v184
  %1440 = vmatprep.subr.mxu0 %v197
  %1441 = vmatpush1.msra.mxu0 %v196
  %1442 = vmatprep.subr.mxu0 %v209
  %1443 = vmatpush1.msra.mxu0 %v208
  %1444 = vmatprep.subr.mxu0 %v221
  %1445 = vmatpush1.msra.mxu0 %v220
  %1446 = vmatprep.subr.mxu0 %v233
  %1447 = vmatpush1.msra.mxu0 %v232
  %1448 = vmatprep.subr.mxu0 %v245
  %1449 = vmatpush1.msra.mxu0 %v244
  %1450 = vmatprep.subr.mxu0 %v257
  %1451 = vmatpush1.msra.mxu0 %v256
  %1452 = vmatprep.subr.mxu0 %v269
  %1453 = vmatpush1.msra.mxu0 %v268
  %1454 = vmatprep.subr.mxu0 %v281
  %1455 = vmatpush1.msra.mxu0 %v280
  %1456 = vmatprep.subr.mxu0 %v293
  %1457 = vmatpush1.msra.mxu0 %v292
  %1458 = vmatprep.subr.mxu0 %v305
  %1459 = vmatpush1.msra.mxu0 %v304
  %1460 = vmatprep.subr.mxu0 %v317
  %1461 = vmatpush1.msra.mxu0 %v316
  %1462 = vmatprep.subr.mxu0 %v329
  %1463 = vmatpush1.msra.mxu0 %v328
  %1464 = vmatprep.subr.mxu0 %v341
  %1465 = vmatpush1.msra.mxu0 %v340
  %1466 = vmatprep.subr.mxu0 %v353
  %1467 = vmatpush1.msra.mxu0 %v352
  %1468 = vmatprep.subr.mxu0 %v365
  %1469 = vmatpush1.msra.mxu0 %v364
  %1470 = vmatprep.subr.mxu0 %v377
  %1471 = vmatpush1.msra.mxu0 %v376
  %1472 = vmatprep.subr.mxu0 %v389
  %1473 = vmatpush1.msra.mxu0 %v388
  %1474 = vmatprep.subr.mxu0 %v401
  %1475 = vmatpush1.msra.mxu0 %v400
  %1476 = vmatprep.mubr.f32.mxu0 %v698
  %1477 = vmatmul.mubr.f32.gmra.mrb[0].mxu0 %v690
  %v1478 = vpop.f32.mrb[0].mxu0
  %v1479 = vadd.f32 0.0, %v1478
  %v1480 = vpop.f32.mrb[0].mxu0
  %v1481 = vadd.f32 0.0, %v1480
  %1482 = vdwg.mxu0
  %1483 = vmatprep.subr.mxu0 %v413
  %1484 = vmatpush1.msra.mxu0 %v412
  %1485 = vmatprep.subr.mxu0 %v425
  %1486 = vmatpush1.msra.mxu0 %v424
  %1487 = vmatprep.subr.mxu0 %v437
  %1488 = vmatpush1.msra.mxu0 %v436
  %1489 = vmatprep.subr.mxu0 %v449
  %1490 = vmatpush1.msra.mxu0 %v448
  %1491 = vmatprep.subr.mxu0 %v461
  %1492 = vmatpush1.msra.mxu0 %v460
  %1493 = vmatprep.subr.mxu0 %v473
  %1494 = vmatpush1.msra.mxu0 %v472
  %1495 = vmatprep.subr.mxu0 %v485
  %1496 = vmatpush1.msra.mxu0 %v484
  %1497 = vmatprep.subr.mxu0 %v497
  %1498 = vmatpush1.msra.mxu0 %v496
  %1499 = vmatprep.subr.mxu0 %v509
  %1500 = vmatpush1.msra.mxu0 %v508
  %1501 = vmatprep.subr.mxu0 %v521
  %1502 = vmatpush1.msra.mxu0 %v520
  %1503 = vmatprep.subr.mxu0 %v533
  %1504 = vmatpush1.msra.mxu0 %v532
  %1505 = vmatprep.subr.mxu0 %v545
  %1506 = vmatpush1.msra.mxu0 %v544
  %1507 = vmatprep.subr.mxu0 %v557
  %1508 = vmatpush1.msra.mxu0 %v556
  %1509 = vmatprep.subr.mxu0 %v569
  %1510 = vmatpush1.msra.mxu0 %v568
  %1511 = vmatprep.subr.mxu0 %v581
  %1512 = vmatpush1.msra.mxu0 %v580
  %1513 = vmatprep.subr.mxu0 %v593
  %1514 = vmatpush1.msra.mxu0 %v592
  %1515 = vmatprep.subr.mxu0 0.0
  %1516 = vmatpush1.msra.mxu0 0.0
  %1517 = vmatprep.subr.mxu0 0.0
  %1518 = vmatpush1.msra.mxu0 0.0
  %1519 = vmatprep.subr.mxu0 0.0
  %1520 = vmatpush1.msra.mxu0 0.0
  %1521 = vmatprep.subr.mxu0 0.0
  %1522 = vmatpush1.msra.mxu0 0.0
  %1523 = vmatprep.subr.mxu0 0.0
  %1524 = vmatpush1.msra.mxu0 0.0
  %1525 = vmatprep.subr.mxu0 0.0
  %1526 = vmatpush1.msra.mxu0 0.0
  %1527 = vmatprep.subr.mxu0 0.0
  %1528 = vmatpush1.msra.mxu0 0.0
  %1529 = vmatprep.subr.mxu0 0.0
  %1530 = vmatpush1.msra.mxu0 0.0
  %1531 = vmatprep.subr.mxu0 0.0
  %1532 = vmatpush1.msra.mxu0 0.0
  %1533 = vmatprep.subr.mxu0 0.0
  %1534 = vmatpush1.msra.mxu0 0.0
  %1535 = vmatprep.subr.mxu0 0.0
  %1536 = vmatpush1.msra.mxu0 0.0
  %1537 = vmatprep.subr.mxu0 0.0
  %1538 = vmatpush1.msra.mxu0 0.0
  %1539 = vmatprep.subr.mxu0 0.0
  %1540 = vmatpush1.msra.mxu0 0.0
  %1541 = vmatprep.subr.mxu0 0.0
  %1542 = vmatpush1.msra.mxu0 0.0
  %1543 = vmatprep.subr.mxu0 0.0
  %1544 = vmatpush1.msra.mxu0 0.0
  %1545 = vmatprep.subr.mxu0 0.0
  %1546 = vmatpush1.msra.mxu0 0.0
  %1547 = vmatprep.mubr.f32.mxu0 0.0
  %1548 = vmatmul.mubr.f32.gmra.mrb[0].mxu0 %v697
  %v1549 = vpop.f32.mrb[0].mxu0
  %v1550 = vadd.f32 %v1479, %v1549
  %v1551 = vpop.f32.mrb[0].mxu0
  %v1552 = vadd.f32 %v1481, %v1551
  %1553 = vdwg.mxu0
  %v1554 = vmul.f32 %v840, %v1124
  %v1555 = vmul.f32 %v842, %v1126
  %v1556 = vmul.f32 %v982, %v1266
  %v1557 = vmul.f32 %v984, %v1268
  %vm1558 = vcmask 1041408
  %v1559 = vsel %vm1558, %v1554, -inf
  %v1560 = vsel %vm1558, %v1555, -inf
  %v1561 = vsel %vm1558, %v1556, -inf
  %v1562 = vsel %vm1558, %v1557, -inf
  %v1563 = vmax.f32 %v1559, %v1560
  %v1564 = vmax.f32 %v1561, %v1562
  %v1565 = vmax.f32 %v1563, %v1564
  %1566 = vmax.xlane.f32.xlu0 %v1565
  %v1567 = vpop.xlane.xlu0 %1566
  %v1568 = vsub.f32 %v1554, %v1567
  %v1569 = vsub.f32 %v1555, %v1567
  %v1570 = vsub.f32 %v1556, %v1567
  %v1571 = vsub.f32 %v1557, %v1567
  %v1572 = vmul.f32 %v1568, 1.442695
  %v1573 = vpow.pop %v1572
  %v1574 = vmul.f32 %v1569, 1.442695
  %v1575 = vpow.pop %v1574
  %v1576 = vmul.f32 %v1570, 1.442695
  %v1577 = vpow.pop %v1576
  %v1578 = vmul.f32 %v1571, 1.442695
  %v1579 = vpow.pop %v1578
  %v1580 = vmul.f32 %v1408, %v1573
  %v1581 = vmul.f32 %v1410, %v1575
  %v1582 = vmul.f32 %v1550, %v1577
  %v1583 = vmul.f32 %v1552, %v1579
  %1584 = vmatprep.subr.mxu0 0.0
  %1585 = vmatpush1.msra.mxu0 %v594
  %1586 = vmatprep.subr.mxu0 0.0
  %1587 = vmatpush1.msra.mxu0 %v595
  %1588 = vmatprep.subr.mxu0 0.0
  %1589 = vmatpush1.msra.mxu0 %v596
  %1590 = vmatprep.subr.mxu0 0.0
  %1591 = vmatpush1.msra.mxu0 %v597
  %1592 = vmatprep.subr.mxu0 0.0
  %1593 = vmatpush1.msra.mxu0 %v598
  %1594 = vmatprep.subr.mxu0 0.0
  %1595 = vmatpush1.msra.mxu0 %v599
  %1596 = vmatprep.subr.mxu0 0.0
  %1597 = vmatpush1.msra.mxu0 %v600
  %1598 = vmatprep.subr.mxu0 0.0
  %1599 = vmatpush1.msra.mxu0 %v601
  %1600 = vmatprep.subr.mxu0 0.0
  %1601 = vmatpush1.msra.mxu0 %v602
  %1602 = vmatprep.subr.mxu0 0.0
  %1603 = vmatpush1.msra.mxu0 %v603
  %1604 = vmatprep.subr.mxu0 0.0
  %1605 = vmatpush1.msra.mxu0 %v604
  %1606 = vmatprep.subr.mxu0 0.0
  %1607 = vmatpush1.msra.mxu0 %v605
  %1608 = vmatprep.subr.mxu0 0.0
  %1609 = vmatpush1.msra.mxu0 %v606
  %1610 = vmatprep.subr.mxu0 0.0
  %1611 = vmatpush1.msra.mxu0 %v607
  %1612 = vmatprep.subr.mxu0 0.0
  %1613 = vmatpush1.msra.mxu0 %v608
  %1614 = vmatprep.subr.mxu0 0.0
  %1615 = vmatpush1.msra.mxu0 %v609
  %1616 = vmatprep.subr.mxu0 0.0
  %1617 = vmatpush1.msra.mxu0 %v610
  %1618 = vmatprep.subr.mxu0 0.0
  %1619 = vmatpush1.msra.mxu0 %v611
  %1620 = vmatprep.subr.mxu0 0.0
  %1621 = vmatpush1.msra.mxu0 %v612
  %1622 = vmatprep.subr.mxu0 0.0
  %1623 = vmatpush1.msra.mxu0 %v613
  %1624 = vmatprep.subr.mxu0 0.0
  %1625 = vmatpush1.msra.mxu0 %v614
  %1626 = vmatprep.subr.mxu0 0.0
  %1627 = vmatpush1.msra.mxu0 %v615
  %1628 = vmatprep.subr.mxu0 0.0
  %1629 = vmatpush1.msra.mxu0 %v616
  %1630 = vmatprep.subr.mxu0 0.0
  %1631 = vmatpush1.msra.mxu0 %v617
  %1632 = vmatprep.subr.mxu0 0.0
  %1633 = vmatpush1.msra.mxu0 %v618
  %1634 = vmatprep.subr.mxu0 0.0
  %1635 = vmatpush1.msra.mxu0 %v619
  %1636 = vmatprep.subr.mxu0 0.0
  %1637 = vmatpush1.msra.mxu0 %v620
  %1638 = vmatprep.subr.mxu0 0.0
  %1639 = vmatpush1.msra.mxu0 %v621
  %1640 = vmatprep.subr.mxu0 0.0
  %1641 = vmatpush1.msra.mxu0 %v622
  %1642 = vmatprep.subr.mxu0 0.0
  %1643 = vmatpush1.msra.mxu0 %v623
  %1644 = vmatprep.subr.mxu0 0.0
  %1645 = vmatpush1.msra.mxu0 %v624
  %1646 = vmatprep.subr.mxu0 0.0
  %1647 = vmatpush1.msra.mxu0 %v625
  %1648 = vmatprep.mubr.f32.mxu0 %v1581
  %1649 = vmatmul.mubr.f32.gmra.mrb[0].mxu0 %v1580
  %v1650 = vpop.f32.mrb[0].mxu0
  %v1651 = vadd.f32 0.0, %v1650
  %v1652 = vpop.f32.mrb[0].mxu0
  %1653 = vdwg.mxu0
  %1654 = vmatprep.subr.mxu0 0.0
  %1655 = vmatpush1.msra.mxu0 %v626
  %1656 = vmatprep.subr.mxu0 0.0
  %1657 = vmatpush1.msra.mxu0 %v627
  %1658 = vmatprep.subr.mxu0 0.0
  %1659 = vmatpush1.msra.mxu0 %v628
  %1660 = vmatprep.subr.mxu0 0.0
  %1661 = vmatpush1.msra.mxu0 %v629
  %1662 = vmatprep.subr.mxu0 0.0
  %1663 = vmatpush1.msra.mxu0 %v630
  %1664 = vmatprep.subr.mxu0 0.0
  %1665 = vmatpush1.msra.mxu0 %v631
  %1666 = vmatprep.subr.mxu0 0.0
  %1667 = vmatpush1.msra.mxu0 %v632
  %1668 = vmatprep.subr.mxu0 0.0
  %1669 = vmatpush1.msra.mxu0 %v633
  %1670 = vmatprep.subr.mxu0 0.0
  %1671 = vmatpush1.msra.mxu0 %v634
  %1672 = vmatprep.subr.mxu0 0.0
  %1673 = vmatpush1.msra.mxu0 %v635
  %1674 = vmatprep.subr.mxu0 0.0
  %1675 = vmatpush1.msra.mxu0 %v636
  %1676 = vmatprep.subr.mxu0 0.0
  %1677 = vmatpush1.msra.mxu0 %v637
  %1678 = vmatprep.subr.mxu0 0.0
  %1679 = vmatpush1.msra.mxu0 %v638
  %1680 = vmatprep.subr.mxu0 0.0
  %1681 = vmatpush1.msra.mxu0 %v639
  %1682 = vmatprep.subr.mxu0 0.0
  %1683 = vmatpush1.msra.mxu0 %v640
  %1684 = vmatprep.subr.mxu0 0.0
  %1685 = vmatpush1.msra.mxu0 %v641
  %1686 = vmatprep.subr.mxu0 0.0
  %1687 = vmatpush1.msra.mxu0 %v642
  %1688 = vmatprep.subr.mxu0 0.0
  %1689 = vmatpush1.msra.mxu0 %v643
  %1690 = vmatprep.subr.mxu0 0.0
  %1691 = vmatpush1.msra.mxu0 %v644
  %1692 = vmatprep.subr.mxu0 0.0
  %1693 = vmatpush1.msra.mxu0 %v645
  %1694 = vmatprep.subr.mxu0 0.0
  %1695 = vmatpush1.msra.mxu0 %v646
  %1696 = vmatprep.subr.mxu0 0.0
  %1697 = vmatpush1.msra.mxu0 %v647
  %1698 = vmatprep.subr.mxu0 0.0
  %1699 = vmatpush1.msra.mxu0 %v648
  %1700 = vmatprep.subr.mxu0 0.0
  %1701 = vmatpush1.msra.mxu0 %v649
  %1702 = vmatprep.subr.mxu0 0.0
  %1703 = vmatpush1.msra.mxu0 %v650
  %1704 = vmatprep.subr.mxu0 0.0
  %1705 = vmatpush1.msra.mxu0 %v651
  %1706 = vmatprep.subr.mxu0 0.0
  %1707 = vmatpush1.msra.mxu0 %v652
  %1708 = vmatprep.subr.mxu0 0.0
  %1709 = vmatpush1.msra.mxu0 %v653
  %1710 = vmatprep.subr.mxu0 0.0
  %1711 = vmatpush1.msra.mxu0 %v654
  %1712 = vmatprep.subr.mxu0 0.0
  %1713 = vmatpush1.msra.mxu0 %v655
  %1714 = vmatprep.subr.mxu0 0.0
  %1715 = vmatpush1.msra.mxu0 %v656
  %1716 = vmatprep.subr.mxu0 0.0
  %1717 = vmatpush1.msra.mxu0 %v657
  %1718 = vmatprep.mubr.f32.mxu0 %v1583
  %1719 = vmatmul.mubr.f32.gmra.mrb[0].mxu0 %v1582
  %v1720 = vpop.f32.mrb[0].mxu0
  %v1721 = vadd.f32 %v1651, %v1720
  %v1722 = vpop.f32.mrb[0].mxu0
  %1723 = vdwg.mxu0
  %1724 = vmatprep.subr.mxu0 0.0
  %1725 = vmatpush1.msra.mxu0 %v594
  %1726 = vmatprep.subr.mxu0 0.0
  %1727 = vmatpush1.msra.mxu0 %v595
  %1728 = vmatprep.subr.mxu0 0.0
  %1729 = vmatpush1.msra.mxu0 %v596
  %1730 = vmatprep.subr.mxu0 0.0
  %1731 = vmatpush1.msra.mxu0 %v597
  %1732 = vmatprep.subr.mxu0 0.0
  %1733 = vmatpush1.msra.mxu0 %v598
  %1734 = vmatprep.subr.mxu0 0.0
  %1735 = vmatpush1.msra.mxu0 %v599
  %1736 = vmatprep.subr.mxu0 0.0
  %1737 = vmatpush1.msra.mxu0 %v600
  %1738 = vmatprep.subr.mxu0 0.0
  %1739 = vmatpush1.msra.mxu0 %v601
  %1740 = vmatprep.subr.mxu0 0.0
  %1741 = vmatpush1.msra.mxu0 %v602
  %1742 = vmatprep.subr.mxu0 0.0
  %1743 = vmatpush1.msra.mxu0 %v603
  %1744 = vmatprep.subr.mxu0 0.0
  %1745 = vmatpush1.msra.mxu0 %v604
  %1746 = vmatprep.subr.mxu0 0.0
  %1747 = vmatpush1.msra.mxu0 %v605
  %1748 = vmatprep.subr.mxu0 0.0
  %1749 = vmatpush1.msra.mxu0 %v606
  %1750 = vmatprep.subr.mxu0 0.0
  %1751 = vmatpush1.msra.mxu0 %v607
  %1752 = vmatprep.subr.mxu0 0.0
  %1753 = vmatpush1.msra.mxu0 %v608
  %1754 = vmatprep.subr.mxu0 0.0
  %1755 = vmatpush1.msra.mxu0 %v609
  %1756 = vmatprep.subr.mxu0 0.0
  %1757 = vmatpush1.msra.mxu0 %v610
  %1758 = vmatprep.subr.mxu0 0.0
  %1759 = vmatpush1.msra.mxu0 %v611
  %1760 = vmatprep.subr.mxu0 0.0
  %1761 = vmatpush1.msra.mxu0 %v612
  %1762 = vmatprep.subr.mxu0 0.0
  %1763 = vmatpush1.msra.mxu0 %v613
  %1764 = vmatprep.subr.mxu0 0.0
  %1765 = vmatpush1.msra.mxu0 %v614
  %1766 = vmatprep.subr.mxu0 0.0
  %1767 = vmatpush1.msra.mxu0 %v615
  %1768 = vmatprep.subr.mxu0 0.0
  %1769 = vmatpush1.msra.mxu0 %v616
  %1770 = vmatprep.subr.mxu0 0.0
  %1771 = vmatpush1.msra.mxu0 %v617
  %1772 = vmatprep.subr.mxu0 0.0
  %1773 = vmatpush1.msra.mxu0 %v618
  %1774 = vmatprep.subr.mxu0 0.0
  %1775 = vmatpush1.msra.mxu0 %v619
  %1776 = vmatprep.subr.mxu0 0.0
  %1777 = vmatpush1.msra.mxu0 %v620
  %1778 = vmatprep.subr.mxu0 0.0
  %1779 = vmatpush1.msra.mxu0 %v621
  %1780 = vmatprep.subr.mxu0 0.0
  %1781 = vmatpush1.msra.mxu0 %v622
  %1782 = vmatprep.subr.mxu0 0.0
  %1783 = vmatpush1.msra.mxu0 %v623
  %1784 = vmatprep.subr.mxu0 0.0
  %1785 = vmatpush1.msra.mxu0 %v624
  %1786 = vmatprep.subr.mxu0 0.0
  %1787 = vmatpush1.msra.mxu0 %v625
  %1788 = vmatprep.mubr.f32.mxu0 %v1575
  %1789 = vmatmul.mubr.f32.gmra.mrb[0].mxu0 %v1573
  %v1790 = vpop.f32.mrb[0].mxu0
  %v1791 = vadd.f32 0.0, %v1790
  %v1792 = vpop.f32.mrb[0].mxu0
  %1793 = vdwg.mxu0
  %1794 = vmatprep.subr.mxu0 0.0
  %1795 = vmatpush1.msra.mxu0 %v626
  %1796 = vmatprep.subr.mxu0 0.0
  %1797 = vmatpush1.msra.mxu0 %v627
  %1798 = vmatprep.subr.mxu0 0.0
  %1799 = vmatpush1.msra.mxu0 %v628
  %1800 = vmatprep.subr.mxu0 0.0
  %1801 = vmatpush1.msra.mxu0 %v629
  %1802 = vmatprep.subr.mxu0 0.0
  %1803 = vmatpush1.msra.mxu0 %v630
  %1804 = vmatprep.subr.mxu0 0.0
  %1805 = vmatpush1.msra.mxu0 %v631
  %1806 = vmatprep.subr.mxu0 0.0
  %1807 = vmatpush1.msra.mxu0 %v632
  %1808 = vmatprep.subr.mxu0 0.0
  %1809 = vmatpush1.msra.mxu0 %v633
  %1810 = vmatprep.subr.mxu0 0.0
  %1811 = vmatpush1.msra.mxu0 %v634
  %1812 = vmatprep.subr.mxu0 0.0
  %1813 = vmatpush1.msra.mxu0 %v635
  %1814 = vmatprep.subr.mxu0 0.0
  %1815 = vmatpush1.msra.mxu0 %v636
  %1816 = vmatprep.subr.mxu0 0.0
  %1817 = vmatpush1.msra.mxu0 %v637
  %1818 = vmatprep.subr.mxu0 0.0
  %1819 = vmatpush1.msra.mxu0 %v638
  %1820 = vmatprep.subr.mxu0 0.0
  %1821 = vmatpush1.msra.mxu0 %v639
  %1822 = vmatprep.subr.mxu0 0.0
  %1823 = vmatpush1.msra.mxu0 %v640
  %1824 = vmatprep.subr.mxu0 0.0
  %1825 = vmatpush1.msra.mxu0 %v641
  %1826 = vmatprep.subr.mxu0 0.0
  %1827 = vmatpush1.msra.mxu0 %v642
  %1828 = vmatprep.subr.mxu0 0.0
  %1829 = vmatpush1.msra.mxu0 %v643
  %1830 = vmatprep.subr.mxu0 0.0
  %1831 = vmatpush1.msra.mxu0 %v644
  %1832 = vmatprep.subr.mxu0 0.0
  %1833 = vmatpush1.msra.mxu0 %v645
  %1834 = vmatprep.subr.mxu0 0.0
  %1835 = vmatpush1.msra.mxu0 %v646
  %1836 = vmatprep.subr.mxu0 0.0
  %1837 = vmatpush1.msra.mxu0 %v647
  %1838 = vmatprep.subr.mxu0 0.0
  %1839 = vmatpush1.msra.mxu0 %v648
  %1840 = vmatprep.subr.mxu0 0.0
  %1841 = vmatpush1.msra.mxu0 %v649
  %1842 = vmatprep.subr.mxu0 0.0
  %1843 = vmatpush1.msra.mxu0 %v650
  %1844 = vmatprep.subr.mxu0 0.0
  %1845 = vmatpush1.msra.mxu0 %v651
  %1846 = vmatprep.subr.mxu0 0.0
  %1847 = vmatpush1.msra.mxu0 %v652
  %1848 = vmatprep.subr.mxu0 0.0
  %1849 = vmatpush1.msra.mxu0 %v653
  %1850 = vmatprep.subr.mxu0 0.0
  %1851 = vmatpush1.msra.mxu0 %v654
  %1852 = vmatprep.subr.mxu0 0.0
  %1853 = vmatpush1.msra.mxu0 %v655
  %1854 = vmatprep.subr.mxu0 0.0
  %1855 = vmatpush1.msra.mxu0 %v656
  %1856 = vmatprep.subr.mxu0 0.0
  %1857 = vmatpush1.msra.mxu0 %v657
  %1858 = vmatprep.mubr.f32.mxu0 %v1579
  %1859 = vmatmul.mubr.f32.gmra.mrb[0].mxu0 %v1577
  %v1860 = vpop.f32.mrb[0].mxu0
  %v1861 = vadd.f32 %v1791, %v1860
  %v1862 = vpop.f32.mrb[0].mxu0
  %1863 = vdwg.mxu0
  %v1864 = vrcp.pop %v1861
  %v1865 = vmul.f32 %v1721, %v1864
  %vm1866 = vcmask 523264
  %v1868 = vsel %vm1866, %v1865, 0
  %1870 = vmatprep.subr.mxu0 %v659
  %1871 = vmatpush1.msra.mxu0 %v658
  %1872 = vmatprep.subr.mxu0 %v662
  %1873 = vmatpush1.msra.mxu0 %v661
  %1874 = vmatprep.subr.mxu0 %v665
  %1875 = vmatpush1.msra.mxu0 %v664
  %1876 = vmatprep.subr.mxu0 %v668
  %1877 = vmatpush1.msra.mxu0 %v667
  %1878 = vmatprep.subr.mxu0 %v671
  %1879 = vmatpush1.msra.mxu0 %v670
  %1880 = vmatprep.subr.mxu0 %v674
  %1881 = vmatpush1.msra.mxu0 %v673
  %1882 = vmatprep.subr.mxu0 %v677
  %1883 = vmatpush1.msra.mxu0 %v676
  %1884 = vmatprep.subr.mxu0 %v680
  %1885 = vmatpush1.msra.mxu0 %v679
  %1886 = vmatprep.subr.mxu0 0.0
  %1887 = vmatpush1.msra.mxu0 0.0
  %1888 = vmatprep.subr.mxu0 0.0
  %1889 = vmatpush1.msra.mxu0 0.0
  %1890 = vmatprep.subr.mxu0 0.0
  %1891 = vmatpush1.msra.mxu0 0.0
  %1892 = vmatprep.subr.mxu0 0.0
  %1893 = vmatpush1.msra.mxu0 0.0
  %1894 = vmatprep.subr.mxu0 0.0
  %1895 = vmatpush1.msra.mxu0 0.0
  %1896 = vmatprep.subr.mxu0 0.0
  %1897 = vmatpush1.msra.mxu0 0.0
  %1898 = vmatprep.subr.mxu0 0.0
  %1899 = vmatpush1.msra.mxu0 0.0
  %1900 = vmatprep.subr.mxu0 0.0
  %1901 = vmatpush1.msra.mxu0 0.0
  %1902 = vmatprep.subr.mxu0 0.0
  %1903 = vmatpush1.msra.mxu0 0.0
  %1904 = vmatprep.subr.mxu0 0.0
  %1905 = vmatpush1.msra.mxu0 0.0
  %1906 = vmatprep.subr.mxu0 0.0
  %1907 = vmatpush1.msra.mxu0 0.0
  %1908 = vmatprep.subr.mxu0 0.0
  %1909 = vmatpush1.msra.mxu0 0.0
  %1910 = vmatprep.subr.mxu0 0.0
  %1911 = vmatpush1.msra.mxu0 0.0
  %1912 = vmatprep.subr.mxu0 0.0
  %1913 = vmatpush1.msra.mxu0 0.0
  %1914 = vmatprep.subr.mxu0 0.0
  %1915 = vmatpush1.msra.mxu0 0.0
  %1916 = vmatprep.subr.mxu0 0.0
  %1917 = vmatpush1.msra.mxu0 0.0
  %1918 = vmatprep.subr.mxu0 0.0
  %1919 = vmatpush1.msra.mxu0 0.0
  %1920 = vmatprep.subr.mxu0 0.0
  %1921 = vmatpush1.msra.mxu0 0.0
  %1922 = vmatprep.subr.mxu0 0.0
  %1923 = vmatpush1.msra.mxu0 0.0
  %1924 = vmatprep.subr.mxu0 0.0
  %1925 = vmatpush1.msra.mxu0 0.0
  %1926 = vmatprep.subr.mxu0 0.0
  %1927 = vmatpush1.msra.mxu0 0.0
  %1928 = vmatprep.subr.mxu0 0.0
  %1929 = vmatpush1.msra.mxu0 0.0
  %1930 = vmatprep.subr.mxu0 0.0
  %1931 = vmatpush1.msra.mxu0 0.0
  %1932 = vmatprep.subr.mxu0 0.0
  %1933 = vmatpush1.msra.mxu0 0.0
  %1934 = vmatprep.mubr.f32.mxu0 0.0
  %1935 = vmatmul.mubr.f32.gmra.mrb[0].mxu0 %v1868
  %v1936 = vpop.f32.mrb[0].mxu0
  %v1937 = vadd.f32 0.0, %v1936
  %v1938 = vpop.f32.mrb[0].mxu0
  %v1939 = vadd.f32 0.0, %v1938
  %1940 = vdwg.mxu0
  %1941 = vmatprep.subr.mxu0 0.0
  %1942 = vmatpush1.msra.mxu0 %v660
  %1943 = vmatprep.subr.mxu0 0.0
  %1944 = vmatpush1.msra.mxu0 %v663
  %1945 = vmatprep.subr.mxu0 0.0
  %1946 = vmatpush1.msra.mxu0 %v666
  %1947 = vmatprep.subr.mxu0 0.0
  %1948 = vmatpush1.msra.mxu0 %v669
  %1949 = vmatprep.subr.mxu0 0.0
  %1950 = vmatpush1.msra.mxu0 %v672
  %1951 = vmatprep.subr.mxu0 0.0
  %1952 = vmatpush1.msra.mxu0 %v675
  %1953 = vmatprep.subr.mxu0 0.0
  %1954 = vmatpush1.msra.mxu0 %v678
  %1955 = vmatprep.subr.mxu0 0.0
  %1956 = vmatpush1.msra.mxu0 %v681
  %1957 = vmatprep.subr.mxu0 0.0
  %1958 = vmatpush1.msra.mxu0 0.0
  %1959 = vmatprep.subr.mxu0 0.0
  %1960 = vmatpush1.msra.mxu0 0.0
  %1961 = vmatprep.subr.mxu0 0.0
  %1962 = vmatpush1.msra.mxu0 0.0
  %1963 = vmatprep.subr.mxu0 0.0
  %1964 = vmatpush1.msra.mxu0 0.0
  %1965 = vmatprep.subr.mxu0 0.0
  %1966 = vmatpush1.msra.mxu0 0.0
  %1967 = vmatprep.subr.mxu0 0.0
  %1968 = vmatpush1.msra.mxu0 0.0
  %1969 = vmatprep.subr.mxu0 0.0
  %1970 = vmatpush1.msra.mxu0 0.0
  %1971 = vmatprep.subr.mxu0 0.0
  %1972 = vmatpush1.msra.mxu0 0.0
  %1973 = vmatprep.subr.mxu0 0.0
  %1974 = vmatpush1.msra.mxu0 0.0
  %1975 = vmatprep.subr.mxu0 0.0
  %1976 = vmatpush1.msra.mxu0 0.0
  %1977 = vmatprep.subr.mxu0 0.0
  %1978 = vmatpush1.msra.mxu0 0.0
  %1979 = vmatprep.subr.mxu0 0.0
  %1980 = vmatpush1.msra.mxu0 0.0
  %1981 = vmatprep.subr.mxu0 0.0
  %1982 = vmatpush1.msra.mxu0 0.0
  %1983 = vmatprep.subr.mxu0 0.0
  %1984 = vmatpush1.msra.mxu0 0.0
  %1985 = vmatprep.subr.mxu0 0.0
  %1986 = vmatpush1.msra.mxu0 0.0
  %1987 = vmatprep.subr.mxu0 0.0
  %1988 = vmatpush1.msra.mxu0 0.0
  %1989 = vmatprep.subr.mxu0 0.0
  %1990 = vmatpush1.msra.mxu0 0.0
  %1991 = vmatprep.subr.mxu0 0.0
  %1992 = vmatpush1.msra.mxu0 0.0
  %1993 = vmatprep.subr.mxu0 0.0
  %1994 = vmatpush1.msra.mxu0 0.0
  %1995 = vmatprep.subr.mxu0 0.0
  %1996 = vmatpush1.msra.mxu0 0.0
  %1997 = vmatprep.subr.mxu0 0.0
  %1998 = vmatpush1.msra.mxu0 0.0
  %1999 = vmatprep.subr.mxu0 0.0
  %2000 = vmatpush1.msra.mxu0 0.0
  %2001 = vmatprep.subr.mxu0 0.0
  %2002 = vmatpush1.msra.mxu0 0.0
  %2003 = vmatprep.subr.mxu0 0.0
  %2004 = vmatpush1.msra.mxu0 0.0
  %2005 = vmatprep.mubr.f32.mxu0 0.0
  %2006 = vmatmul.mubr.f32.gmra.mrb[0].mxu0 %v1868
  %v2007 = vpop.f32.mrb[0].mxu0
  %v2008 = vadd.f32 0.0, %v2007
  %v2009 = vpop.f32.mrb[0].mxu0
  %2010 = vdwg.mxu0
  %v2014 = vcombine.low %v1937, %v1939
  %v2016 = vunpack.c.l.s4 1983009808
  %v2017 = vunpack.c.0.s8 %v2016
  %v2018 = vlaneseq
  %v2019 = vshrl.u32 %v2018, 7
  %v2020 = vsub.s32 %v2017, %v2019
  %v2021 = vrot.slane %v2014, %v2020
  %v2023 = vunpack.c.l.s4 1983009808
  %v2024 = vunpack.c.0.s8 %v2023
  %v2025 = vlaneseq
  %v2026 = vshrl.u32 %v2025, 7
  %v2027 = vsub.s32 %v2024, %v2026
  %v2028 = vrot.slane %v2008, %v2027
  %v2029 = vcombine.low %v2021, %v2028
  %2031 = vst [vmem:[%s4] sm:$0x3f] %v2029
  // Predicated region
  $region18: #{ultimus.1} parent=0 // pred_check
    _
  $region19: #{ultimus.1} parent=0 // pred_check_branch
    %2033 = sbr.rel (0) target = $region21
  $region20: #{ultimus.1} parent=0 // pred_region
    _
  $region21: #{ultimus.1} parent=0 // pred_fallthru
    _
  // Predicated region
  $region22: #{ultimus.1} parent=0 // pred_check
    _
  $region23: #{ultimus.1} parent=0 // pred_check_branch
    %2035 = sbr.rel (0) target = $region25
  $region24: #{ultimus.1} parent=0 // pred_region
    _
  $region25: #{ultimus.1} parent=0 // pred_fallthru
    _

</llo_original>
